<compile_context>
chip_gen: v5e
topology: v5e:2x2
jax: 0.10.0
libtpu: 0.0.40
codegen_flags: <defaults>
</compile_context>

<pallas_src>
import functools

import jax
import jax.numpy as jnp
import numpy as np
from jax import lax
from jax.experimental import pallas as pl
from jax.experimental.pallas import tpu as pltpu


def co_block_kernel(heads, dim_head, compute_dtype, approx_recip,
                    feat_ref, pos_ref, center_ref, cpos_ref,
                    w_in_ref, w_out_ref, w_ffn_ref, vec_ref,
                    out_feat_ref, out_center_ref):
    f32 = jnp.float32
    cd = compute_dtype
    inner = heads * dim_head
    scale = dim_head ** (-0.5)

    feat = feat_ref[...]                       # (N, dim) fp32
    center = center_ref[...]                   # (M, dim) fp32
    N = feat.shape[0]
    M = center.shape[0]
    qin = feat + pos_ref[...]                  # with_pos_embed(feat, pos)
    kin = center + cpos_ref[...]               # with_pos_embed(center, center_pos)

    def proj(idx, x):
        # (inner, dim) . (L, dim)^T -> (inner, L); cast to the MXU compute
        # dtype at the (inner, L) stage (review item 6), then split inner ->
        # (heads, dim_head) on the sublane-tile boundary (dim_head == 8):
        # a layout-preserving, free reshape.
        y = lax.dot_general(w_in_ref[idx], x.astype(cd),
                            (((1,), (1,)), ((), ())),
                            preferred_element_type=f32)
        return y.astype(cd).reshape(heads, dim_head, x.shape[0])

    q = proj(0, qin)        # (h, d, N)
    k = proj(1, kin)        # (h, d, M)
    v1 = proj(2, feat)      # (h, d, N)
    v2 = proj(3, center)    # (h, d, M)

    # scores: einsum('hdn,hdm->hnm', q, k) * scale
    s = lax.dot_general(q, k, (((1,), (1,)), ((0,), (0,))),
                        preferred_element_type=f32) * scale        # (h, N, M)

    # Dual softmax with PER-AXIS max shifts (matches the reference semantics
    # exactly; avoids the shared-global-max underflow corner case).  Both exps
    # are tiny (h*N*M elems) and land on the otherwise idle EUP; normalisation
    # uses the EUP reciprocal instead of VALU divides.
    e1 = jnp.exp(s - jnp.max(s, axis=1, keepdims=True))            # soft_hw
    e2 = jnp.exp(s - jnp.max(s, axis=2, keepdims=True))            # soft_k
    a1 = e1 * pl.reciprocal(jnp.sum(e1, axis=1, keepdims=True), approx=approx_recip)
    a2 = e2 * pl.reciprocal(jnp.sum(e2, axis=2, keepdims=True), approx=approx_recip)
    a1 = a1.astype(cd)
    a2 = a2.astype(cd)
    # dropout(p=0.0) is the identity in eval mode.

    # Attention outputs produced directly in (h, d, L) layout:
    #   out_feat heads  : einsum('hdm,hnm->hdn', v2, a2)   == (attn2 @ v2)^T
    #   out_center heads: einsum('hdn,hnm->hdm', v1, a1)   == (attn1^T @ v1)^T
    of = lax.dot_general(v2, a2, (((2,), (2,)), ((0,), (0,))),
                         preferred_element_type=f32)               # (h, d, N)
    oc = lax.dot_general(v1, a1, (((2,), (1,)), ((0,), (0,))),
                         preferred_element_type=f32)               # (h, d, M)

    # Head-merge fused into the output projections: (h, d, L) -> (inner, L) is
    # a free sublane-tile merge; one K=inner contraction per output against
    # w_out (inner, dim) replaces the per-head batched dots + head sum.
    of2 = of.reshape(inner, N).astype(cd)
    oc2 = oc.reshape(inner, M).astype(cd)
    out_f = lax.dot_general(of2, w_out_ref[0], (((0,), (0,)), ((), ())),
                            preferred_element_type=f32) + feat     # (N, dim)
    out_c = lax.dot_general(oc2, w_out_ref[1], (((0,), (0,)), ((), ())),
                            preferred_element_type=f32) + center   # (M, dim)

    def layernorm(x, g, b):                    # fp32 elementwise path
        mu = jnp.mean(x, axis=-1, keepdims=True)
        xc = x - mu
        var = jnp.mean(xc * xc, axis=-1, keepdims=True)
        return xc * lax.rsqrt(var + 1e-5) * g + b

    out_f = layernorm(out_f, vec_ref[0], vec_ref[1])
    out_c = layernorm(out_c, vec_ref[2], vec_ref[3])

    def ffn(x, w1_idx, w2_idx, b):
        h1 = jnp.maximum(jnp.dot(x.astype(cd), w_ffn_ref[w1_idx],
                                 preferred_element_type=f32), 0.0)
        return jnp.dot(h1.astype(cd), w_ffn_ref[w2_idx],
                       preferred_element_type=f32) + b

    out_feat_ref[...] = (ffn(out_f, 0, 1, vec_ref[4]) + out_f
                         ).astype(out_feat_ref.dtype)
    out_center_ref[...] = (ffn(out_c, 2, 3, vec_ref[5]) + out_c
                           ).astype(out_center_ref.dtype)


def pack_params(params, *, compute_dtype=jnp.bfloat16):
    """ONE-TIME parameter preprocessing (hoisted out of the per-call path).

    Packs the 16 weight/bias tensors into 4 stacked arrays (fewer DMA
    descriptors, padded (8,128) tiles, free static leading-dim indexing) and
    casts the matmul weights to the MXU compute dtype.
    """
    (wq, wk, wv1, wv2, wo1, wo2,
     ln1_g, ln1_b, ln2_g, ln2_b,
     f1_w1, f1_w2, f1_b2, f2_w1, f2_w2, f2_b2) = params
    dim = wq.shape[0]
    w_in = jnp.stack([wq.T, wk.T, wv1.T, wv2.T]).astype(compute_dtype)     # (4, inner, dim)
    w_out = jnp.stack([wo1, wo2]).astype(compute_dtype)                    # (2, inner, dim)
    w_ffn = jnp.stack([f1_w1, f1_w2, f2_w1, f2_w2]).astype(compute_dtype)  # (4, dim, dim)
    vecs = jnp.stack([ln1_g.reshape(1, dim), ln1_b.reshape(1, dim),
                      ln2_g.reshape(1, dim), ln2_b.reshape(1, dim),
                      f1_b2.reshape(1, dim), f2_b2.reshape(1, dim)]
                     ).astype(jnp.float32)                                 # (6, 1, dim)
    return w_in, w_out, w_ffn, vecs


def co_block(feat, center, pos, center_pos, packed, *, heads, dim_head,
             approx_recip=None):
    """feat (B,N,dim), center (B,M,dim), pos (B,dim,H,W) NCHW, center_pos (B,M,dim).

    `packed` comes from pack_params(); its dtype selects the MXU compute path
    (bf16 default = fast, fp32 = exact).  Elementwise math is always fp32.
    """
    B, N, dim = feat.shape
    M = center.shape[1]
    w_in, w_out, w_ffn, vecs = packed
    compute_dtype = jnp.dtype(w_in.dtype)
    if approx_recip is None:
        approx_recip = bool(compute_dtype != jnp.dtype(jnp.float32))

    # Module-mandated glue: pos.flatten(2).permute(0, 2, 1): NCHW -> (B, H*W, dim).
    pos_flat = jnp.transpose(pos.reshape(B, dim, -1), (0, 2, 1))
    assert pos_flat.shape == (B, N, dim)

    seq_spec = lambda L: pl.BlockSpec((None, L, dim), lambda b: (b, 0, 0))

    def full_spec(a):
        nd = a.ndim
        return pl.BlockSpec(a.shape, lambda b: (0,) * nd)

    kernel = functools.partial(co_block_kernel, heads, dim_head,
                               compute_dtype, approx_recip)

    out_feat, out_center = pl.pallas_call(
        kernel,
        out_shape=(jax.ShapeDtypeStruct((B, N, dim), jnp.float32),
                   jax.ShapeDtypeStruct((B, M, dim), jnp.float32)),
        grid_spec=pltpu.PrefetchScalarGridSpec(
            num_scalar_prefetch=0,
            grid=(B,),
            in_specs=[seq_spec(N),          # feat
                      seq_spec(N),          # pos (flattened)
                      seq_spec(M),          # center
                      seq_spec(M),          # center_pos
                      full_spec(w_in), full_spec(w_out),
                      full_spec(w_ffn), full_spec(vecs)],
            out_specs=[seq_spec(N), seq_spec(M)],
        ),
        compiler_params=pltpu.CompilerParams(
            dimension_semantics=("parallel",)),
    )(feat, pos_flat, center, center_pos, w_in, w_out, w_ffn, vecs)
    return out_feat, out_center


def co_block_ref(feat, center, pos, center_pos, params, *, heads, dim_head):
    """Pure-JAX reference mirroring the PyTorch forward (for verification)."""
    (wq, wk, wv1, wv2, wo1, wo2,
     ln1_g, ln1_b, ln2_g, ln2_b,
     f1_w1, f1_w2, f1_b2, f2_w1, f2_w2, f2_b2) = params
    B, N, dim = feat.shape
    M = center.shape[1]
    scale = dim_head ** (-0.5)
    pos_flat = jnp.transpose(pos.reshape(B, dim, -1), (0, 2, 1))

    def split_heads(x):  # (B, L, h*d) -> (B, h, L, d)
        return jnp.transpose(x.reshape(B, -1, heads, dim_head), (0, 2, 1, 3))

    q = split_heads((feat + pos_flat) @ wq)
    k = split_heads((center + center_pos) @ wk)
    v1 = split_heads(feat @ wv1)
    v2 = split_heads(center @ wv2)

    attn = jnp.einsum('bhnd,bhmd->bhnm', q, k) * scale
    attn1 = jax.nn.softmax(attn, axis=-2)
    attn2 = jax.nn.softmax(attn, axis=-1)
    out_f = jnp.einsum('bhnm,bhmd->bhnd', attn2, v2)
    out_c = jnp.einsum('bhnm,bhnd->bhmd', attn1, v1)
    out_f = jnp.transpose(out_f, (0, 2, 1, 3)).reshape(B, N, heads * dim_head)
    out_c = jnp.transpose(out_c, (0, 2, 1, 3)).reshape(B, M, heads * dim_head)

    out_f = out_f @ wo1 + feat
    out_c = out_c @ wo2 + center

    def layernorm(x, g, b):
        mu = jnp.mean(x, axis=-1, keepdims=True)
        var = jnp.mean((x - mu) ** 2, axis=-1, keepdims=True)
        return (x - mu) * jax.lax.rsqrt(var + 1e-5) * g + b

    out_f = layernorm(out_f, ln1_g, ln1_b)
    out_c = layernorm(out_c, ln2_g, ln2_b)

    def ffn(x, w1, w2, b2):
        return jnp.maximum(x @ w1, 0.0) @ w2 + b2

    return ffn(out_f, f1_w1, f1_w2, f1_b2) + out_f, ffn(out_c, f2_w1, f2_w2, f2_b2) + out_c


if __name__ == "__main__":
    # Small shapes consistent with the module.
    B, dim, heads, dim_head = 2, 32, 4, 8
    inner = heads * dim_head          # 32
    H = W = 4
    N = H * W                         # 16 feature tokens
    M = 8                             # 8 center tokens

    key = jax.random.PRNGKey(0)
    ks = jax.random.split(key, 20)

    feat = jax.random.normal(ks[0], (B, N, dim), jnp.float32)
    center = jax.random.normal(ks[1], (B, M, dim), jnp.float32)
    pos = jax.random.normal(ks[2], (B, dim, H, W), jnp.float32)          # NCHW pos map
    center_pos = jax.random.normal(ks[3], (B, M, dim), jnp.float32)

    def lin(k, fan_in, fan_out):
        bound = 1.0 / np.sqrt(fan_in)
        return jax.random.uniform(k, (fan_in, fan_out), jnp.float32, -bound, bound)

    params = (
        lin(ks[4], dim, inner),    # q_proj
        lin(ks[5], dim, inner),    # k_proj
        lin(ks[6], dim, inner),    # v1_proj
        lin(ks[7], dim, inner),    # v2_proj
        lin(ks[8], inner, dim),    # out1_proj
        lin(ks[9], inner, dim),    # out2_proj
        jnp.ones((1, dim), jnp.float32),   # norm1 weight
        jnp.zeros((1, dim), jnp.float32),  # norm1 bias
        jnp.ones((1, dim), jnp.float32),   # norm2 weight
        jnp.zeros((1, dim), jnp.float32),  # norm2 bias
        lin(ks[10], dim, dim),     # ffn1[0] (no bias)
        lin(ks[11], dim, dim),     # ffn1[2] weight
        jax.random.uniform(ks[12], (1, dim), jnp.float32,
                           -1.0 / np.sqrt(dim), 1.0 / np.sqrt(dim)),  # ffn1[2] bias
        lin(ks[13], dim, dim),     # ffn2[0] (no bias)
        lin(ks[14], dim, dim),     # ffn2[2] weight
        jax.random.uniform(ks[15], (1, dim), jnp.float32,
                           -1.0 / np.sqrt(dim), 1.0 / np.sqrt(dim)),  # ffn2[2] bias
    )

    ref_feat, ref_center = co_block_ref(feat, center, pos, center_pos, params,
                                        heads=heads, dim_head=dim_head)

    fwd = jax.jit(functools.partial(co_block, heads=heads, dim_head=dim_head))

    # Exact path (fp32 MXU inputs + exact reciprocal): tight verification.
    packed_f32 = pack_params(params, compute_dtype=jnp.float32)
    out_feat, out_center = fwd(feat, center, pos, center_pos, packed_f32)
    jax.block_until_ready((out_feat, out_center))
    np.testing.assert_allclose(np.asarray(out_feat), np.asarray(ref_feat),
                               rtol=1e-4, atol=1e-4)
    np.testing.assert_allclose(np.asarray(out_center), np.asarray(ref_center),
                               rtol=1e-4, atol=1e-4)

    # Default fast path (bf16 MXU inputs, fp32 accumulation, approx EUP
    # reciprocals in the softmax normalisation): loose check vs fp32 reference.
    packed_bf16 = pack_params(params)           # compute_dtype defaults to bf16
    fm_feat, fm_center = fwd(feat, center, pos, center_pos, packed_bf16)
    jax.block_until_ready((fm_feat, fm_center))
    np.testing.assert_allclose(np.asarray(fm_feat), np.asarray(ref_feat),
                               rtol=5e-2, atol=5e-2)
    np.testing.assert_allclose(np.asarray(fm_center), np.asarray(ref_center),
                               rtol=5e-2, atol=5e-2)

    print("KERNEL_OK")
</pallas_src>

<mosaic_0001>
module attributes {stable_mosaic.version = 11 : i64} {
  func.func @co_block_kernel(%arg0: i32, %arg1: memref<1x16x32xf32, #tpu.memory_space<vmem>>, %arg2: memref<1x16x32xf32, #tpu.memory_space<vmem>>, %arg3: memref<1x8x32xf32, #tpu.memory_space<vmem>>, %arg4: memref<1x8x32xf32, #tpu.memory_space<vmem>>, %arg5: memref<4x32x32xf32, #tpu.memory_space<vmem>>, %arg6: memref<2x32x32xf32, #tpu.memory_space<vmem>>, %arg7: memref<4x32x32xf32, #tpu.memory_space<vmem>>, %arg8: memref<6x1x32xf32, #tpu.memory_space<vmem>>, %arg9: memref<1x16x32xf32, #tpu.memory_space<vmem>>, %arg10: memref<1x8x32xf32, #tpu.memory_space<vmem>>) attributes {dimension_semantics = [#tpu.dimension_semantics<parallel>], iteration_bounds = array<i64: 2>, scalar_prefetch = 0 : i64, scratch_operands = 0 : i64, tpu.core_type = #tpu.core_type<tc>, window_params = [{transform_indices = @transform_0, window_bounds = array<i64: 1, 16, 32>}, {transform_indices = @transform_1, window_bounds = array<i64: 1, 16, 32>}, {transform_indices = @transform_2, window_bounds = array<i64: 1, 8, 32>}, {transform_indices = @transform_3, window_bounds = array<i64: 1, 8, 32>}, {pipeline_mode = #tpu.pipeline_mode<synchronous>, transform_indices = @transform_4, window_bounds = array<i64: 4, 32, 32>}, {pipeline_mode = #tpu.pipeline_mode<synchronous>, transform_indices = @transform_5, window_bounds = array<i64: 2, 32, 32>}, {pipeline_mode = #tpu.pipeline_mode<synchronous>, transform_indices = @transform_6, window_bounds = array<i64: 4, 32, 32>}, {pipeline_mode = #tpu.pipeline_mode<synchronous>, transform_indices = @transform_7, window_bounds = array<i64: 6, 1, 32>}, {transform_indices = @transform_8, window_bounds = array<i64: 1, 16, 32>}, {transform_indices = @transform_9, window_bounds = array<i64: 1, 8, 32>}]} {
    %c0 = arith.constant 0 : index
    %c0_0 = arith.constant 0 : index
    %c0_1 = arith.constant 0 : index
    %0 = vector.load %arg1[%c0, %c0_0, %c0_1] : memref<1x16x32xf32, #tpu.memory_space<vmem>>, vector<1x16x32xf32>
    %1 = vector.shape_cast %0 : vector<1x16x32xf32> to vector<16x32xf32>
    %c0_2 = arith.constant 0 : index
    %c0_3 = arith.constant 0 : index
    %c0_4 = arith.constant 0 : index
    %2 = vector.load %arg3[%c0_2, %c0_3, %c0_4] : memref<1x8x32xf32, #tpu.memory_space<vmem>>, vector<1x8x32xf32>
    %3 = vector.shape_cast %2 : vector<1x8x32xf32> to vector<8x32xf32>
    %c0_5 = arith.constant 0 : index
    %c0_6 = arith.constant 0 : index
    %c0_7 = arith.constant 0 : index
    %4 = vector.load %arg2[%c0_5, %c0_6, %c0_7] : memref<1x16x32xf32, #tpu.memory_space<vmem>>, vector<1x16x32xf32>
    %5 = vector.shape_cast %4 : vector<1x16x32xf32> to vector<16x32xf32>
    %6 = arith.addf %1, %5 : vector<16x32xf32>
    %c0_8 = arith.constant 0 : index
    %c0_9 = arith.constant 0 : index
    %c0_10 = arith.constant 0 : index
    %7 = vector.load %arg4[%c0_8, %c0_9, %c0_10] : memref<1x8x32xf32, #tpu.memory_space<vmem>>, vector<1x8x32xf32>
    %8 = vector.shape_cast %7 : vector<1x8x32xf32> to vector<8x32xf32>
    %9 = arith.addf %3, %8 : vector<8x32xf32>
    %c0_11 = arith.constant 0 : index
    %c0_12 = arith.constant 0 : index
    %c0_13 = arith.constant 0 : index
    %10 = vector.load %arg5[%c0_11, %c0_12, %c0_13] : memref<4x32x32xf32, #tpu.memory_space<vmem>>, vector<1x32x32xf32>
    %11 = vector.shape_cast %10 : vector<1x32x32xf32> to vector<32x32xf32>
    %cst = arith.constant dense<0.000000e+00> : vector<32x16xf32>
    %12 = tpu.matmul %11, %6, %cst {dimension_numbers = #tpu.dot_dimension_numbers<[1], [1], [0], [0], [0, 0, 1, 0], [], []>} : vector<32x32xf32>, vector<16x32xf32>, vector<32x16xf32> -> vector<32x16xf32>
    %13 = vector.shape_cast %12 : vector<32x16xf32> to vector<4x8x16xf32>
    %c1 = arith.constant 1 : index
    %c0_14 = arith.constant 0 : index
    %c0_15 = arith.constant 0 : index
    %14 = vector.load %arg5[%c1, %c0_14, %c0_15] : memref<4x32x32xf32, #tpu.memory_space<vmem>>, vector<1x32x32xf32>
    %15 = vector.shape_cast %14 : vector<1x32x32xf32> to vector<32x32xf32>
    %cst_16 = arith.constant dense<0.000000e+00> : vector<32x8xf32>
    %16 = tpu.matmul %15, %9, %cst_16 {dimension_numbers = #tpu.dot_dimension_numbers<[1], [1], [0], [0], [0, 0, 1, 0], [], []>} : vector<32x32xf32>, vector<8x32xf32>, vector<32x8xf32> -> vector<32x8xf32>
    %17 = vector.shape_cast %16 : vector<32x8xf32> to vector<4x8x8xf32>
    %c2 = arith.constant 2 : index
    %c0_17 = arith.constant 0 : index
    %c0_18 = arith.constant 0 : index
    %18 = vector.load %arg5[%c2, %c0_17, %c0_18] : memref<4x32x32xf32, #tpu.memory_space<vmem>>, vector<1x32x32xf32>
    %19 = vector.shape_cast %18 : vector<1x32x32xf32> to vector<32x32xf32>
    %cst_19 = arith.constant dense<0.000000e+00> : vector<32x16xf32>
    %20 = tpu.matmul %19, %1, %cst_19 {dimension_numbers = #tpu.dot_dimension_numbers<[1], [1], [0], [0], [0, 0, 1, 0], [], []>} : vector<32x32xf32>, vector<16x32xf32>, vector<32x16xf32> -> vector<32x16xf32>
    %21 = vector.shape_cast %20 : vector<32x16xf32> to vector<4x8x16xf32>
    %c3 = arith.constant 3 : index
    %c0_20 = arith.constant 0 : index
    %c0_21 = arith.constant 0 : index
    %22 = vector.load %arg5[%c3, %c0_20, %c0_21] : memref<4x32x32xf32, #tpu.memory_space<vmem>>, vector<1x32x32xf32>
    %23 = vector.shape_cast %22 : vector<1x32x32xf32> to vector<32x32xf32>
    %cst_22 = arith.constant dense<0.000000e+00> : vector<32x8xf32>
    %24 = tpu.matmul %23, %3, %cst_22 {dimension_numbers = #tpu.dot_dimension_numbers<[1], [1], [0], [0], [0, 0, 1, 0], [], []>} : vector<32x32xf32>, vector<8x32xf32>, vector<32x8xf32> -> vector<32x8xf32>
    %25 = vector.shape_cast %24 : vector<32x8xf32> to vector<4x8x8xf32>
    %cst_23 = arith.constant dense<0.000000e+00> : vector<4x16x8xf32>
    %26 = tpu.matmul %13, %17, %cst_23 {dimension_numbers = #tpu.dot_dimension_numbers<[1], [1], [2], [2], [0, 0, 0, 2, 1, 2], [0], [0]>} : vector<4x8x16xf32>, vector<4x8x8xf32>, vector<4x16x8xf32> -> vector<4x16x8xf32>
    %cst_24 = arith.constant 0.353553385 : f32
    %27 = vector.broadcast %cst_24 : f32 to vector<4x16x8xf32>
    %28 = arith.mulf %26, %27 : vector<4x16x8xf32>
    %cst_25 = arith.constant dense<0xFF800000> : vector<4x8xf32>
    %29 = vector.multi_reduction <maximumf>, %28, %cst_25 [1] : vector<4x16x8xf32> to vector<4x8xf32>
    %30 = vector.shape_cast %29 : vector<4x8xf32> to vector<4x1x8xf32>
    %31 = vector.broadcast %30 : vector<4x1x8xf32> to vector<4x16x8xf32>
    %32 = arith.subf %28, %31 : vector<4x16x8xf32>
    %33 = math.exp %32 : vector<4x16x8xf32>
    %cst_26 = arith.constant dense<0xFF800000> : vector<4x16xf32>
    %34 = vector.multi_reduction <maximumf>, %28, %cst_26 [2] : vector<4x16x8xf32> to vector<4x16xf32>
    %35 = vector.shape_cast %34 : vector<4x16xf32> to vector<4x16x1xf32>
    %36 = vector.broadcast %35 : vector<4x16x1xf32> to vector<4x16x8xf32>
    %37 = arith.subf %28, %36 : vector<4x16x8xf32>
    %38 = math.exp %37 : vector<4x16x8xf32>
    %cst_27 = arith.constant dense<0.000000e+00> : vector<4x8xf32>
    %39 = vector.multi_reduction <add>, %33, %cst_27 [1] : vector<4x16x8xf32> to vector<4x8xf32>
    %40 = vector.shape_cast %39 : vector<4x8xf32> to vector<4x1x8xf32>
    %41 = tpu.reciprocal %40 : vector<4x1x8xf32> -> vector<4x1x8xf32>
    %42 = vector.broadcast %41 : vector<4x1x8xf32> to vector<4x16x8xf32>
    %43 = arith.mulf %33, %42 : vector<4x16x8xf32>
    %cst_28 = arith.constant dense<0.000000e+00> : vector<4x16xf32>
    %44 = vector.multi_reduction <add>, %38, %cst_28 [2] : vector<4x16x8xf32> to vector<4x16xf32>
    %45 = vector.shape_cast %44 : vector<4x16xf32> to vector<4x16x1xf32>
    %46 = tpu.reciprocal %45 : vector<4x16x1xf32> -> vector<4x16x1xf32>
    %47 = vector.broadcast %46 : vector<4x16x1xf32> to vector<4x16x8xf32>
    %48 = arith.mulf %38, %47 : vector<4x16x8xf32>
    %cst_29 = arith.constant dense<0.000000e+00> : vector<4x8x16xf32>
    %49 = tpu.matmul %25, %48, %cst_29 {dimension_numbers = #tpu.dot_dimension_numbers<[2], [2], [1], [1], [0, 0, 0, 1, 1, 1], [0], [0]>} : vector<4x8x8xf32>, vector<4x16x8xf32>, vector<4x8x16xf32> -> vector<4x8x16xf32>
    %cst_30 = arith.constant dense<0.000000e+00> : vector<4x8x8xf32>
    %50 = tpu.matmul %21, %43, %cst_30 {dimension_numbers = #tpu.dot_dimension_numbers<[2], [1], [1], [2], [0, 0, 0, 1, 1, 2], [0], [0]>} : vector<4x8x16xf32>, vector<4x16x8xf32>, vector<4x8x8xf32> -> vector<4x8x8xf32>
    %51 = vector.shape_cast %49 : vector<4x8x16xf32> to vector<32x16xf32>
    %52 = vector.shape_cast %50 : vector<4x8x8xf32> to vector<32x8xf32>
    %c0_31 = arith.constant 0 : index
    %c0_32 = arith.constant 0 : index
    %c0_33 = arith.constant 0 : index
    %53 = vector.load %arg6[%c0_31, %c0_32, %c0_33] : memref<2x32x32xf32, #tpu.memory_space<vmem>>, vector<1x32x32xf32>
    %54 = vector.shape_cast %53 : vector<1x32x32xf32> to vector<32x32xf32>
    %cst_34 = arith.constant dense<0.000000e+00> : vector<16x32xf32>
    %55 = tpu.matmul %51, %54, %cst_34 {dimension_numbers = #tpu.dot_dimension_numbers<[0], [0], [1], [1], [0, 1, 1, 1], [], []>} : vector<32x16xf32>, vector<32x32xf32>, vector<16x32xf32> -> vector<16x32xf32>
    %56 = arith.addf %55, %1 : vector<16x32xf32>
    %c1_35 = arith.constant 1 : index
    %c0_36 = arith.constant 0 : index
    %c0_37 = arith.constant 0 : index
    %57 = vector.load %arg6[%c1_35, %c0_36, %c0_37] : memref<2x32x32xf32, #tpu.memory_space<vmem>>, vector<1x32x32xf32>
    %58 = vector.shape_cast %57 : vector<1x32x32xf32> to vector<32x32xf32>
    %cst_38 = arith.constant dense<0.000000e+00> : vector<8x32xf32>
    %59 = tpu.matmul %52, %58, %cst_38 {dimension_numbers = #tpu.dot_dimension_numbers<[0], [0], [1], [1], [0, 1, 1, 1], [], []>} : vector<32x8xf32>, vector<32x32xf32>, vector<8x32xf32> -> vector<8x32xf32>
    %60 = arith.addf %59, %3 : vector<8x32xf32>
    %c0_39 = arith.constant 0 : index
    %c0_40 = arith.constant 0 : index
    %c0_41 = arith.constant 0 : index
    %61 = vector.load %arg8[%c0_39, %c0_40, %c0_41] : memref<6x1x32xf32, #tpu.memory_space<vmem>>, vector<1x1x32xf32>
    %62 = vector.shape_cast %61 : vector<1x1x32xf32> to vector<1x32xf32>
    %c1_42 = arith.constant 1 : index
    %c0_43 = arith.constant 0 : index
    %c0_44 = arith.constant 0 : index
    %63 = vector.load %arg8[%c1_42, %c0_43, %c0_44] : memref<6x1x32xf32, #tpu.memory_space<vmem>>, vector<1x1x32xf32>
    %64 = vector.shape_cast %63 : vector<1x1x32xf32> to vector<1x32xf32>
    %cst_45 = arith.constant dense<0.000000e+00> : vector<16xf32>
    %65 = vector.multi_reduction <add>, %56, %cst_45 [1] : vector<16x32xf32> to vector<16xf32>
    %66 = vector.shape_cast %65 : vector<16xf32> to vector<16x1xf32>
    %cst_46 = arith.constant 3.200000e+01 : f32
    %67 = vector.broadcast %cst_46 : f32 to vector<16x1xf32>
    %68 = arith.divf %66, %67 : vector<16x1xf32>
    %69 = vector.broadcast %68 : vector<16x1xf32> to vector<16x32xf32>
    %70 = arith.subf %56, %69 : vector<16x32xf32>
    %71 = arith.mulf %70, %70 : vector<16x32xf32>
    %cst_47 = arith.constant dense<0.000000e+00> : vector<16xf32>
    %72 = vector.multi_reduction <add>, %71, %cst_47 [1] : vector<16x32xf32> to vector<16xf32>
    %73 = vector.shape_cast %72 : vector<16xf32> to vector<16x1xf32>
    %cst_48 = arith.constant 3.200000e+01 : f32
    %74 = vector.broadcast %cst_48 : f32 to vector<16x1xf32>
    %75 = arith.divf %73, %74 : vector<16x1xf32>
    %cst_49 = arith.constant 9.99999974E-6 : f32
    %76 = vector.broadcast %cst_49 : f32 to vector<16x1xf32>
    %77 = arith.addf %75, %76 : vector<16x1xf32>
    %78 = math.rsqrt %77 : vector<16x1xf32>
    %79 = vector.broadcast %78 : vector<16x1xf32> to vector<16x32xf32>
    %80 = arith.mulf %70, %79 : vector<16x32xf32>
    %81 = vector.broadcast %62 : vector<1x32xf32> to vector<16x32xf32>
    %82 = arith.mulf %80, %81 : vector<16x32xf32>
    %83 = vector.broadcast %64 : vector<1x32xf32> to vector<16x32xf32>
    %84 = arith.addf %82, %83 : vector<16x32xf32>
    %c2_50 = arith.constant 2 : index
    %c0_51 = arith.constant 0 : index
    %c0_52 = arith.constant 0 : index
    %85 = vector.load %arg8[%c2_50, %c0_51, %c0_52] : memref<6x1x32xf32, #tpu.memory_space<vmem>>, vector<1x1x32xf32>
    %86 = vector.shape_cast %85 : vector<1x1x32xf32> to vector<1x32xf32>
    %c3_53 = arith.constant 3 : index
    %c0_54 = arith.constant 0 : index
    %c0_55 = arith.constant 0 : index
    %87 = vector.load %arg8[%c3_53, %c0_54, %c0_55] : memref<6x1x32xf32, #tpu.memory_space<vmem>>, vector<1x1x32xf32>
    %88 = vector.shape_cast %87 : vector<1x1x32xf32> to vector<1x32xf32>
    %cst_56 = arith.constant dense<0.000000e+00> : vector<8xf32>
    %89 = vector.multi_reduction <add>, %60, %cst_56 [1] : vector<8x32xf32> to vector<8xf32>
    %90 = vector.shape_cast %89 : vector<8xf32> to vector<8x1xf32>
    %cst_57 = arith.constant 3.200000e+01 : f32
    %91 = vector.broadcast %cst_57 : f32 to vector<8x1xf32>
    %92 = arith.divf %90, %91 : vector<8x1xf32>
    %93 = vector.broadcast %92 : vector<8x1xf32> to vector<8x32xf32>
    %94 = arith.subf %60, %93 : vector<8x32xf32>
    %95 = arith.mulf %94, %94 : vector<8x32xf32>
    %cst_58 = arith.constant dense<0.000000e+00> : vector<8xf32>
    %96 = vector.multi_reduction <add>, %95, %cst_58 [1] : vector<8x32xf32> to vector<8xf32>
    %97 = vector.shape_cast %96 : vector<8xf32> to vector<8x1xf32>
    %cst_59 = arith.constant 3.200000e+01 : f32
    %98 = vector.broadcast %cst_59 : f32 to vector<8x1xf32>
    %99 = arith.divf %97, %98 : vector<8x1xf32>
    %cst_60 = arith.constant 9.99999974E-6 : f32
    %100 = vector.broadcast %cst_60 : f32 to vector<8x1xf32>
    %101 = arith.addf %99, %100 : vector<8x1xf32>
    %102 = math.rsqrt %101 : vector<8x1xf32>
    %103 = vector.broadcast %102 : vector<8x1xf32> to vector<8x32xf32>
    %104 = arith.mulf %94, %103 : vector<8x32xf32>
    %105 = vector.broadcast %86 : vector<1x32xf32> to vector<8x32xf32>
    %106 = arith.mulf %104, %105 : vector<8x32xf32>
    %107 = vector.broadcast %88 : vector<1x32xf32> to vector<8x32xf32>
    %108 = arith.addf %106, %107 : vector<8x32xf32>
    %c4 = arith.constant 4 : index
    %c0_61 = arith.constant 0 : index
    %c0_62 = arith.constant 0 : index
    %109 = vector.load %arg8[%c4, %c0_61, %c0_62] : memref<6x1x32xf32, #tpu.memory_space<vmem>>, vector<1x1x32xf32>
    %110 = vector.shape_cast %109 : vector<1x1x32xf32> to vector<1x32xf32>
    %c0_63 = arith.constant 0 : index
    %c0_64 = arith.constant 0 : index
    %c0_65 = arith.constant 0 : index
    %111 = vector.load %arg7[%c0_63, %c0_64, %c0_65] : memref<4x32x32xf32, #tpu.memory_space<vmem>>, vector<1x32x32xf32>
    %112 = vector.shape_cast %111 : vector<1x32x32xf32> to vector<32x32xf32>
    %cst_66 = arith.constant dense<0.000000e+00> : vector<16x32xf32>
    %113 = tpu.matmul %84, %112, %cst_66 {dimension_numbers = #tpu.dot_dimension_numbers<[1], [0], [0], [1], [0, 0, 1, 1], [], []>} : vector<16x32xf32>, vector<32x32xf32>, vector<16x32xf32> -> vector<16x32xf32>
    %cst_67 = arith.constant 0.000000e+00 : f32
    %114 = vector.broadcast %cst_67 : f32 to vector<16x32xf32>
    %115 = arith.maximumf %113, %114 : vector<16x32xf32>
    %c1_68 = arith.constant 1 : index
    %c0_69 = arith.constant 0 : index
    %c0_70 = arith.constant 0 : index
    %116 = vector.load %arg7[%c1_68, %c0_69, %c0_70] : memref<4x32x32xf32, #tpu.memory_space<vmem>>, vector<1x32x32xf32>
    %117 = vector.shape_cast %116 : vector<1x32x32xf32> to vector<32x32xf32>
    %cst_71 = arith.constant dense<0.000000e+00> : vector<16x32xf32>
    %118 = tpu.matmul %115, %117, %cst_71 {dimension_numbers = #tpu.dot_dimension_numbers<[1], [0], [0], [1], [0, 0, 1, 1], [], []>} : vector<16x32xf32>, vector<32x32xf32>, vector<16x32xf32> -> vector<16x32xf32>
    %119 = vector.broadcast %110 : vector<1x32xf32> to vector<16x32xf32>
    %120 = arith.addf %118, %119 : vector<16x32xf32>
    %121 = arith.addf %120, %84 : vector<16x32xf32>
    %c0_72 = arith.constant 0 : index
    %c0_73 = arith.constant 0 : index
    %c0_74 = arith.constant 0 : index
    %122 = vector.load %arg9[%c0_72, %c0_73, %c0_74] : memref<1x16x32xf32, #tpu.memory_space<vmem>>, vector<1x16x32xf32>
    %123 = vector.shape_cast %122 : vector<1x16x32xf32> to vector<16x32xf32>
    %124 = vector.shape_cast %121 : vector<16x32xf32> to vector<1x16x32xf32>
    tpu.vector_store %arg9[%c0_72, %c0_73, %c0_74], %124 {strides = array<i32>} : memref<1x16x32xf32, #tpu.memory_space<vmem>>, vector<1x16x32xf32>,
    %c5 = arith.constant 5 : index
    %c0_75 = arith.constant 0 : index
    %c0_76 = arith.constant 0 : index
    %125 = vector.load %arg8[%c5, %c0_75, %c0_76] : memref<6x1x32xf32, #tpu.memory_space<vmem>>, vector<1x1x32xf32>
    %126 = vector.shape_cast %125 : vector<1x1x32xf32> to vector<1x32xf32>
    %c2_77 = arith.constant 2 : index
    %c0_78 = arith.constant 0 : index
    %c0_79 = arith.constant 0 : index
    %127 = vector.load %arg7[%c2_77, %c0_78, %c0_79] : memref<4x32x32xf32, #tpu.memory_space<vmem>>, vector<1x32x32xf32>
    %128 = vector.shape_cast %127 : vector<1x32x32xf32> to vector<32x32xf32>
    %cst_80 = arith.constant dense<0.000000e+00> : vector<8x32xf32>
    %129 = tpu.matmul %108, %128, %cst_80 {dimension_numbers = #tpu.dot_dimension_numbers<[1], [0], [0], [1], [0, 0, 1, 1], [], []>} : vector<8x32xf32>, vector<32x32xf32>, vector<8x32xf32> -> vector<8x32xf32>
    %cst_81 = arith.constant 0.000000e+00 : f32
    %130 = vector.broadcast %cst_81 : f32 to vector<8x32xf32>
    %131 = arith.maximumf %129, %130 : vector<8x32xf32>
    %c3_82 = arith.constant 3 : index
    %c0_83 = arith.constant 0 : index
    %c0_84 = arith.constant 0 : index
    %132 = vector.load %arg7[%c3_82, %c0_83, %c0_84] : memref<4x32x32xf32, #tpu.memory_space<vmem>>, vector<1x32x32xf32>
    %133 = vector.shape_cast %132 : vector<1x32x32xf32> to vector<32x32xf32>
    %cst_85 = arith.constant dense<0.000000e+00> : vector<8x32xf32>
    %134 = tpu.matmul %131, %133, %cst_85 {dimension_numbers = #tpu.dot_dimension_numbers<[1], [0], [0], [1], [0, 0, 1, 1], [], []>} : vector<8x32xf32>, vector<32x32xf32>, vector<8x32xf32> -> vector<8x32xf32>
    %135 = vector.broadcast %126 : vector<1x32xf32> to vector<8x32xf32>
    %136 = arith.addf %134, %135 : vector<8x32xf32>
    %137 = arith.addf %136, %108 : vector<8x32xf32>
    %c0_86 = arith.constant 0 : index
    %c0_87 = arith.constant 0 : index
    %c0_88 = arith.constant 0 : index
    %138 = vector.load %arg10[%c0_86, %c0_87, %c0_88] : memref<1x8x32xf32, #tpu.memory_space<vmem>>, vector<1x8x32xf32>
    %139 = vector.shape_cast %138 : vector<1x8x32xf32> to vector<8x32xf32>
    %140 = vector.shape_cast %137 : vector<8x32xf32> to vector<1x8x32xf32>
    tpu.vector_store %arg10[%c0_86, %c0_87, %c0_88], %140 {strides = array<i32>} : memref<1x8x32xf32, #tpu.memory_space<vmem>>, vector<1x8x32xf32>,
    return
  }
  func.func @transform_0(%arg0: i32) -> (i32, i32, i32) {
    %c0_i32 = arith.constant 0 : i32
    %c0_i32_0 = arith.constant 0 : i32
    %c0_i32_1 = arith.constant 0 : i32
    return %arg0, %c0_i32, %c0_i32_0 : i32, i32, i32
  }
  func.func @transform_1(%arg0: i32) -> (i32, i32, i32) {
    %c0_i32 = arith.constant 0 : i32
    %c0_i32_0 = arith.constant 0 : i32
    %c0_i32_1 = arith.constant 0 : i32
    return %arg0, %c0_i32, %c0_i32_0 : i32, i32, i32
  }
  func.func @transform_2(%arg0: i32) -> (i32, i32, i32) {
    %c0_i32 = arith.constant 0 : i32
    %c0_i32_0 = arith.constant 0 : i32
    %c0_i32_1 = arith.constant 0 : i32
    return %arg0, %c0_i32, %c0_i32_0 : i32, i32, i32
  }
  func.func @transform_3(%arg0: i32) -> (i32, i32, i32) {
    %c0_i32 = arith.constant 0 : i32
    %c0_i32_0 = arith.constant 0 : i32
    %c0_i32_1 = arith.constant 0 : i32
    return %arg0, %c0_i32, %c0_i32_0 : i32, i32, i32
  }
  func.func @transform_4(%arg0: i32) -> (i32, i32, i32) {
    %c0_i32 = arith.constant 0 : i32
    %c0_i32_0 = arith.constant 0 : i32
    %c0_i32_1 = arith.constant 0 : i32
    %c0_i32_2 = arith.constant 0 : i32
    return %c0_i32, %c0_i32_0, %c0_i32_1 : i32, i32, i32
  }
  func.func @transform_5(%arg0: i32) -> (i32, i32, i32) {
    %c0_i32 = arith.constant 0 : i32
    %c0_i32_0 = arith.constant 0 : i32
    %c0_i32_1 = arith.constant 0 : i32
    %c0_i32_2 = arith.constant 0 : i32
    return %c0_i32, %c0_i32_0, %c0_i32_1 : i32, i32, i32
  }
  func.func @transform_6(%arg0: i32) -> (i32, i32, i32) {
    %c0_i32 = arith.constant 0 : i32
    %c0_i32_0 = arith.constant 0 : i32
    %c0_i32_1 = arith.constant 0 : i32
    %c0_i32_2 = arith.constant 0 : i32
    return %c0_i32, %c0_i32_0, %c0_i32_1 : i32, i32, i32
  }
  func.func @transform_7(%arg0: i32) -> (i32, i32, i32) {
    %c0_i32 = arith.constant 0 : i32
    %c0_i32_0 = arith.constant 0 : i32
    %c0_i32_1 = arith.constant 0 : i32
    %c0_i32_2 = arith.constant 0 : i32
    return %c0_i32, %c0_i32_0, %c0_i32_1 : i32, i32, i32
  }
  func.func @transform_8(%arg0: i32) -> (i32, i32, i32) {
    %c0_i32 = arith.constant 0 : i32
    %c0_i32_0 = arith.constant 0 : i32
    %c0_i32_1 = arith.constant 0 : i32
    return %arg0, %c0_i32, %c0_i32_0 : i32, i32, i32
  }
  func.func @transform_9(%arg0: i32) -> (i32, i32, i32) {
    %c0_i32 = arith.constant 0 : i32
    %c0_i32_0 = arith.constant 0 : i32
    %c0_i32_1 = arith.constant 0 : i32
    return %arg0, %c0_i32, %c0_i32_0 : i32, i32, i32
  }
}

</mosaic_0001>

<llo_original>
// kernel: co_block.1
$region0: #{co_block.1}
  #allocation0 [shape = 'u32[]', space=smem, size = 0x4, offset = 0x4, fixed_abs, tag = 'smem constant byte address 0x4 - core index']
  #allocation1 [shape = 'u32[72,128]{1,0:T(1,128)}', space=vmem, size = 0x9000, scoped, tag = 'internal scratch']
  %s0 = inlined_call_operand.hbm [shape: f32[2,16,32], index: 0, kind: input, shape index: {}]
  %s1 = inlined_call_operand.hbm [shape: f32[2,16,32], index: 1, kind: input, shape index: {}]
  %s2 = inlined_call_operand.hbm [shape: f32[2,8,32], index: 2, kind: input, shape index: {}]
  %s3 = inlined_call_operand.hbm [shape: f32[2,8,32], index: 3, kind: input, shape index: {}]
  %s4 = inlined_call_operand.hbm [shape: f32[4,32,32], index: 4, kind: input, shape index: {}]
  %s5 = inlined_call_operand.hbm [shape: f32[2,32,32], index: 5, kind: input, shape index: {}]
  %s6 = inlined_call_operand.hbm [shape: f32[4,32,32], index: 6, kind: input, shape index: {}]
  %s7 = inlined_call_operand.vmem [shape: f32[6,1,32], index: 7, kind: input, shape index: {}]
  %s8 = inlined_call_operand.hbm [shape: f32[2,16,32], index: 8, kind: output, shape index: {0}]
  %s9 = inlined_call_operand.hbm [shape: f32[2,8,32], index: 9, kind: output, shape index: {1}]
  %10 = xla_tuple %s8, %s9
  %s11 = sld [smem:[#allocation0]]
  $region101: #{co_block.1} parent=0
    _
  %s13 = ssub.s32 1, %s11
  %s14 = scalar_select 0, %s13, %s11
  $region1: #{co_block.1} parent=0
    #allocation2 [shape = 'u8[16384]{0}', space=vmem, size = 0x4000, scoped, tag = 'input window, operand 0']
    #allocation3 [shape = 's32[2]{0}', space=sflag, size = 0x8, scoped, tag = 'scoped memory for co_block.1']
    #allocation4 [shape = 's32[2]{0}', space=sflag, size = 0x8, scoped, tag = 'scoped memory for co_block.1']
    #allocation5 [shape = 'u8[16384]{0}', space=vmem, size = 0x4000, scoped, tag = 'input window, operand 1']
    #allocation6 [shape = 's32[2]{0}', space=sflag, size = 0x8, scoped, tag = 'scoped memory for co_block.1']
    #allocation7 [shape = 'u8[8192]{0}', space=vmem, size = 0x2000, scoped, tag = 'input window, operand 2']
    #allocation8 [shape = 'u8[8192]{0}', space=vmem, size = 0x2000, scoped, tag = 'input window, operand 3']
    #allocation9 [shape = 's32[2]{0}', space=sflag, size = 0x8, scoped, tag = 'scoped memory for co_block.1']
    #allocation10 [shape = 'u8[65536]{0}', space=vmem, size = 0x10000, scoped, tag = 'input window, operand 4, single buffered']
    #allocation11 [shape = 'u8[32768]{0}', space=vmem, size = 0x8000, scoped, tag = 'input window, operand 5, single buffered']
    #allocation12 [shape = 's32[1]{0}', space=sflag, size = 0x4, scoped, tag = 'scoped memory for co_block.1']
    #allocation13 [shape = 'u8[65536]{0}', space=vmem, size = 0x10000, scoped, tag = 'input window, operand 6, single buffered']
    #allocation14 [shape = 'u8[16384]{0}', space=vmem, size = 0x4000, scoped, tag = 'output window, operand 0']
    #allocation15 [shape = 'u8[8192]{0}', space=vmem, size = 0x2000, scoped, tag = 'output window, operand 1']
    #allocation16 [shape = 's32[2]{0}', space=sflag, size = 0x8, scoped, tag = 'scoped memory for co_block.1']
    %15 = vsyncpa [#allocation3], 0
    %s16 = scalar_lea.sflag [#allocation3], 1
    %17 = vsyncpa %s16, 0
    %18 = vsyncpa [#allocation6], 0
    %s19 = scalar_lea.sflag [#allocation6], 1
    %20 = vsyncpa %s19, 0
    %21 = vsyncpa [#allocation9], 0
    %s22 = scalar_lea.sflag [#allocation9], 1
    %23 = vsyncpa %s22, 0
    %24 = vsyncpa [#allocation12], 0
    %25 = vsyncpa [#allocation4], 0
    %s26 = scalar_lea.sflag [#allocation4], 1
    %27 = vsyncpa %s26, 0
    %28 = vsyncpa [#allocation16], 0
    %s29 = scalar_lea.sflag [#allocation16], 1
    %30 = vsyncpa %s29, 0
    loop: start=0, step=1, limit=4
    $region2: #{co_block.1} parent=1 // loop_pre_header
      _
    $region3: #{co_block.1} parent=1 // loop_header
      %s32 = sphi 0, %s36
      %p33 = scmp.ge.s32.totalorder %s32, 4
      %s42 = sphi 0, %s44
      %s45 = sphi 0, %s42
      %s46 = sphi 0, %s45
      %s62 = sphi 0, %s46
      %s68 = sphi 0, %s70
      %s71 = sphi 0, %s68
      %s72 = sphi 0, %s71
      %s88 = sphi 0, %s72
      %s94 = sphi 0, %s96
      %s97 = sphi 0, %s94
      %s98 = sphi 0, %s97
      %s114 = sphi 0, %s98
      %s120 = sphi 0, %s122
      %s123 = sphi 0, %s120
      %s124 = sphi 0, %s123
      %s140 = sphi 0, %s124
      %s144 = sphi 0, %s144
      %s146 = sphi 0, %s144
      %s147 = sphi 0, %s146
      %s161 = sphi 0, %s147
      %s165 = sphi 0, %s165
      %s167 = sphi 0, %s165
      %s168 = sphi 0, %s167
      %s182 = sphi 0, %s168
      %s186 = sphi 0, %s186
      %s188 = sphi 0, %s186
      %s189 = sphi 0, %s188
      %s203 = sphi 0, %s189
      %s207 = sphi 0, %s207
      %s209 = sphi 0, %s207
      %s210 = sphi 0, %s209
      %s224 = sphi 0, %s210
      %s230 = sphi 0, %s232
      %s233 = sphi 0, %s230
      %s234 = sphi 0, %s233
      %s250 = sphi 0, %s234
      %s256 = sphi 0, %s258
      %s259 = sphi 0, %s256
      %s260 = sphi 0, %s259
      %s276 = sphi 0, %s260
    $region4: #{co_block.1} parent=1 // loop_header_branch
      %35 = sbr.rel (%p33) target = $region8
    $region5: #{co_block.1} parent=1 // loop_body
      %s37 = ssub.s32 %s32, 1
      %s38 = ssub.s32 %s32, 2
      %s39 = sadd.s32 %s32, 1
      %s40 = ssub.s32 %s32, %s39
      %p41 = scmp.eq.s32.totalorder %s40, 0
      %s43 = sadd.s32 %s42, 1
      %s44 = scalar_select %p41, %s42, %s43
      %p47 = pneg %p41
      %p48 = scmp.eq.s32.totalorder %s32, 1
      %p49 = por %p47, %p48
      %p50 = scmp.ne.s32.totalorder %s42, %s45
      %p51 = scmp.eq.s32.totalorder %s32, 0
      %p52 = por %p50, %p51
      %p53 = scmp.ne.s32.totalorder %s42, %s45
      %p54 = scmp.eq.s32.totalorder %s37, 1
      %p55 = por %p53, %p54
      %p56 = scmp.ne.s32.totalorder %s45, %s46
      %p57 = scmp.eq.s32.totalorder %s37, 0
      %p58 = por %p56, %p57
      %p59 = scmp.ne.s32.totalorder %s45, %s46
      %p60 = scmp.eq.s32.totalorder %s38, 1
      %p61 = por %p59, %p60
      %p63 = scmp.ne.s32.totalorder %s46, %s62
      %p64 = scmp.eq.s32.totalorder %s38, 0
      %p65 = por %p63, %p64
      %s66 = ssub.s32 %s32, %s39
      %p67 = scmp.eq.s32.totalorder %s66, 0
      %s69 = sadd.s32 %s68, 1
      %s70 = scalar_select %p67, %s68, %s69
      %p73 = pneg %p67
      %p74 = scmp.eq.s32.totalorder %s32, 1
      %p75 = por %p73, %p74
      %p76 = scmp.ne.s32.totalorder %s68, %s71
      %p77 = scmp.eq.s32.totalorder %s32, 0
      %p78 = por %p76, %p77
      %p79 = scmp.ne.s32.totalorder %s68, %s71
      %p80 = scmp.eq.s32.totalorder %s37, 1
      %p81 = por %p79, %p80
      %p82 = scmp.ne.s32.totalorder %s71, %s72
      %p83 = scmp.eq.s32.totalorder %s37, 0
      %p84 = por %p82, %p83
      %p85 = scmp.ne.s32.totalorder %s71, %s72
      %p86 = scmp.eq.s32.totalorder %s38, 1
      %p87 = por %p85, %p86
      %p89 = scmp.ne.s32.totalorder %s72, %s88
      %p90 = scmp.eq.s32.totalorder %s38, 0
      %p91 = por %p89, %p90
      %s92 = ssub.s32 %s32, %s39
      %p93 = scmp.eq.s32.totalorder %s92, 0
      %s95 = sadd.s32 %s94, 1
      %s96 = scalar_select %p93, %s94, %s95
      %p99 = pneg %p93
      %p100 = scmp.eq.s32.totalorder %s32, 1
      %p101 = por %p99, %p100
      %p102 = scmp.ne.s32.totalorder %s94, %s97
      %p103 = scmp.eq.s32.totalorder %s32, 0
      %p104 = por %p102, %p103
      %p105 = scmp.ne.s32.totalorder %s94, %s97
      %p106 = scmp.eq.s32.totalorder %s37, 1
      %p107 = por %p105, %p106
      %p108 = scmp.ne.s32.totalorder %s97, %s98
      %p109 = scmp.eq.s32.totalorder %s37, 0
      %p110 = por %p108, %p109
      %p111 = scmp.ne.s32.totalorder %s97, %s98
      %p112 = scmp.eq.s32.totalorder %s38, 1
      %p113 = por %p111, %p112
      %p115 = scmp.ne.s32.totalorder %s98, %s114
      %p116 = scmp.eq.s32.totalorder %s38, 0
      %p117 = por %p115, %p116
      %s118 = ssub.s32 %s32, %s39
      %p119 = scmp.eq.s32.totalorder %s118, 0
      %s121 = sadd.s32 %s120, 1
      %s122 = scalar_select %p119, %s120, %s121
      %p125 = pneg %p119
      %p126 = scmp.eq.s32.totalorder %s32, 1
      %p127 = por %p125, %p126
      %p128 = scmp.ne.s32.totalorder %s120, %s123
      %p129 = scmp.eq.s32.totalorder %s32, 0
      %p130 = por %p128, %p129
      %p131 = scmp.ne.s32.totalorder %s120, %s123
      %p132 = scmp.eq.s32.totalorder %s37, 1
      %p133 = por %p131, %p132
      %p134 = scmp.ne.s32.totalorder %s123, %s124
      %p135 = scmp.eq.s32.totalorder %s37, 0
      %p136 = por %p134, %p135
      %p137 = scmp.ne.s32.totalorder %s123, %s124
      %p138 = scmp.eq.s32.totalorder %s38, 1
      %p139 = por %p137, %p138
      %p141 = scmp.ne.s32.totalorder %s124, %s140
      %p142 = scmp.eq.s32.totalorder %s38, 0
      %p143 = por %p141, %p142
      %s145 = sadd.s32 %s144, 1
      %p148 = scmp.eq.s32.totalorder %s32, 1
      %p149 = scmp.ne.s32.totalorder %s144, %s146
      %p150 = scmp.eq.s32.totalorder %s32, 0
      %p151 = por %p149, %p150
      %p152 = scmp.ne.s32.totalorder %s144, %s146
      %p153 = scmp.eq.s32.totalorder %s37, 1
      %p154 = por %p152, %p153
      %p155 = scmp.ne.s32.totalorder %s146, %s147
      %p156 = scmp.eq.s32.totalorder %s37, 0
      %p157 = por %p155, %p156
      %p158 = scmp.ne.s32.totalorder %s146, %s147
      %p159 = scmp.eq.s32.totalorder %s38, 1
      %p160 = por %p158, %p159
      %p162 = scmp.ne.s32.totalorder %s147, %s161
      %p163 = scmp.eq.s32.totalorder %s38, 0
      %p164 = por %p162, %p163
      %s166 = sadd.s32 %s165, 1
      %p169 = scmp.eq.s32.totalorder %s32, 1
      %p170 = scmp.ne.s32.totalorder %s165, %s167
      %p171 = scmp.eq.s32.totalorder %s32, 0
      %p172 = por %p170, %p171
      %p173 = scmp.ne.s32.totalorder %s165, %s167
      %p174 = scmp.eq.s32.totalorder %s37, 1
      %p175 = por %p173, %p174
      %p176 = scmp.ne.s32.totalorder %s167, %s168
      %p177 = scmp.eq.s32.totalorder %s37, 0
      %p178 = por %p176, %p177
      %p179 = scmp.ne.s32.totalorder %s167, %s168
      %p180 = scmp.eq.s32.totalorder %s38, 1
      %p181 = por %p179, %p180
      %p183 = scmp.ne.s32.totalorder %s168, %s182
      %p184 = scmp.eq.s32.totalorder %s38, 0
      %p185 = por %p183, %p184
      %s187 = sadd.s32 %s186, 1
      %p190 = scmp.eq.s32.totalorder %s32, 1
      %p191 = scmp.ne.s32.totalorder %s186, %s188
      %p192 = scmp.eq.s32.totalorder %s32, 0
      %p193 = por %p191, %p192
      %p194 = scmp.ne.s32.totalorder %s186, %s188
      %p195 = scmp.eq.s32.totalorder %s37, 1
      %p196 = por %p194, %p195
      %p197 = scmp.ne.s32.totalorder %s188, %s189
      %p198 = scmp.eq.s32.totalorder %s37, 0
      %p199 = por %p197, %p198
      %p200 = scmp.ne.s32.totalorder %s188, %s189
      %p201 = scmp.eq.s32.totalorder %s38, 1
      %p202 = por %p200, %p201
      %p204 = scmp.ne.s32.totalorder %s189, %s203
      %p205 = scmp.eq.s32.totalorder %s38, 0
      %p206 = por %p204, %p205
      %s208 = sadd.s32 %s207, 1
      %p211 = scmp.eq.s32.totalorder %s32, 1
      %p212 = scmp.ne.s32.totalorder %s207, %s209
      %p213 = scmp.eq.s32.totalorder %s32, 0
      %p214 = por %p212, %p213
      %p215 = scmp.ne.s32.totalorder %s207, %s209
      %p216 = scmp.eq.s32.totalorder %s37, 1
      %p217 = por %p215, %p216
      %p218 = scmp.ne.s32.totalorder %s209, %s210
      %p219 = scmp.eq.s32.totalorder %s37, 0
      %p220 = por %p218, %p219
      %p221 = scmp.ne.s32.totalorder %s209, %s210
      %p222 = scmp.eq.s32.totalorder %s38, 1
      %p223 = por %p221, %p222
      %p225 = scmp.ne.s32.totalorder %s210, %s224
      %p226 = scmp.eq.s32.totalorder %s38, 0
      %p227 = por %p225, %p226
      %s228 = ssub.s32 %s32, %s39
      %p229 = scmp.eq.s32.totalorder %s228, 0
      %s231 = sadd.s32 %s230, 1
      %s232 = scalar_select %p229, %s230, %s231
      %p235 = pneg %p229
      %p236 = scmp.eq.s32.totalorder %s32, 1
      %p237 = por %p235, %p236
      %p238 = scmp.ne.s32.totalorder %s230, %s233
      %p239 = scmp.eq.s32.totalorder %s32, 0
      %p240 = por %p238, %p239
      %p241 = scmp.ne.s32.totalorder %s230, %s233
      %p242 = scmp.eq.s32.totalorder %s37, 1
      %p243 = por %p241, %p242
      %p244 = scmp.ne.s32.totalorder %s233, %s234
      %p245 = scmp.eq.s32.totalorder %s37, 0
      %p246 = por %p244, %p245
      %p247 = scmp.ne.s32.totalorder %s233, %s234
      %p248 = scmp.eq.s32.totalorder %s38, 1
      %p249 = por %p247, %p248
      %p251 = scmp.ne.s32.totalorder %s234, %s250
      %p252 = scmp.eq.s32.totalorder %s38, 0
      %p253 = por %p251, %p252
      %s254 = ssub.s32 %s32, %s39
      %p255 = scmp.eq.s32.totalorder %s254, 0
      %s257 = sadd.s32 %s256, 1
      %s258 = scalar_select %p255, %s256, %s257
      %p261 = pneg %p255
      %p262 = scmp.eq.s32.totalorder %s32, 1
      %p263 = por %p261, %p262
      %p264 = scmp.ne.s32.totalorder %s256, %s259
      %p265 = scmp.eq.s32.totalorder %s32, 0
      %p266 = por %p264, %p265
      %p267 = scmp.ne.s32.totalorder %s256, %s259
      %p268 = scmp.eq.s32.totalorder %s37, 1
      %p269 = por %p267, %p268
      %p270 = scmp.ne.s32.totalorder %s259, %s260
      %p271 = scmp.eq.s32.totalorder %s37, 0
      %p272 = por %p270, %p271
      %p273 = scmp.ne.s32.totalorder %s259, %s260
      %p274 = scmp.eq.s32.totalorder %s38, 1
      %p275 = por %p273, %p274
      %p277 = scmp.ne.s32.totalorder %s260, %s276
      %p278 = scmp.eq.s32.totalorder %s38, 0
      %p279 = por %p277, %p278
      %p280 = scmp.le.s32.totalorder 1, %s32
      %p281 = scmp.lt.s32.totalorder %s32, 3
      %p282 = pnand %p280, %p281
      %p283 = pneg %p282
      // Predicated region
      $region9: #{co_block.1} parent=5 // pred_check
        _
      $region10: #{co_block.1} parent=5 // pred_check_branch
        %285 = sbr.rel (%p282) target = $region12
      $region11: #{co_block.1} parent=5 // pred_region
        %s286 = ssub.s32 %s32, 1
        // Predicated region
        $region13: #{co_block.1} parent=11 // pred_check
          %p287 = pneg %p157
        $region14: #{co_block.1} parent=11 // pred_check_branch
          %289 = sbr.rel (%p287) target = $region16
        $region15: #{co_block.1} parent=11 // pred_region
          %291 = vsyncadd [#allocation9], 0
          %s292 = sshll.u32 %s4, 4
          %s293 = int_to_ptr.hbm [resolvable:$true] %s292
          %s294 = sshll.u32 [#allocation10], 4
          %s295 = int_to_ptr.vmem [resolvable:$true] %s294
          %300 = dma.hbm_to_vmem [thread:$0]  %s293, 2048, %s295, [#allocation9], 128, 128, 8
        $region16: #{co_block.1} parent=11 // pred_fallthru
          _
        // Predicated region
        $region17: #{co_block.1} parent=11 // pred_check
          %p301 = pneg %p178
        $region18: #{co_block.1} parent=11 // pred_check_branch
          %303 = sbr.rel (%p301) target = $region20
        $region19: #{co_block.1} parent=11 // pred_region
          %305 = vsyncadd [#allocation12], 0
          %s306 = sshll.u32 %s5, 4
          %s307 = int_to_ptr.hbm [resolvable:$true] %s306
          %s308 = sshll.u32 [#allocation11], 4
          %s309 = int_to_ptr.vmem [resolvable:$true] %s308
          %314 = dma.hbm_to_vmem [thread:$0]  %s307, 1024, %s309, [#allocation12], 128, 128, 8
        $region20: #{co_block.1} parent=11 // pred_fallthru
          _
        // Predicated region
        $region21: #{co_block.1} parent=11 // pred_check
          %p315 = pneg %p199
        $region22: #{co_block.1} parent=11 // pred_check_branch
          %317 = sbr.rel (%p315) target = $region24
        $region23: #{co_block.1} parent=11 // pred_region
          %319 = vsyncadd [#allocation12], 0
          %s320 = sshll.u32 %s6, 4
          %s321 = int_to_ptr.hbm [resolvable:$true] %s320
          %s322 = sshll.u32 [#allocation13], 4
          %s323 = int_to_ptr.vmem [resolvable:$true] %s322
          %328 = dma.hbm_to_vmem [thread:$0]  %s321, 2048, %s323, [#allocation12], 128, 128, 8
        $region24: #{co_block.1} parent=11 // pred_fallthru
          _
        // Predicated region
        $region25: #{co_block.1} parent=11 // pred_check
          %p329 = pneg %p220
        $region26: #{co_block.1} parent=11 // pred_check_branch
          %331 = sbr.rel (%p329) target = $region28
        $region27: #{co_block.1} parent=11 // pred_region
          _
        $region28: #{co_block.1} parent=11 // pred_fallthru
          _
      $region12: #{co_block.1} parent=5 // pred_fallthru
        _
      %p332 = scmp.lt.s32.totalorder %s32, 2
      // Predicated region
      $region29: #{co_block.1} parent=5 // pred_check
        %p333 = pneg %p332
      $region30: #{co_block.1} parent=5 // pred_check_branch
        %335 = sbr.rel (%p333) target = $region32
      $region31: #{co_block.1} parent=5 // pred_region
        // Predicated region
        $region33: #{co_block.1} parent=31 // pred_check
          %p336 = pneg %p52
        $region34: #{co_block.1} parent=31 // pred_check_branch
          %338 = sbr.rel (%p336) target = $region36
        $region35: #{co_block.1} parent=31 // pred_region
          %s339 = sand.u32 %s42, 1
          %s340 = scalar_lea.sflag [#allocation3], %s339
          %s341 = sand.u32 %s42, 1
          %s342 = smul.addr %s341, 16
          %s343 = scalar_lea.vmem [#allocation2], %s342
          %345 = vsyncadd %s340, 0
          %s346 = smul.addr %s32, 2
          %s347 = smul.addr %s346, 8
          %s348 = scalar_lea.hbm %s0, %s347
          %s349 = sshll.u32 %s348, 4
          %s350 = int_to_ptr.hbm [resolvable:$true] %s349
          %s351 = sshll.u32 %s343, 4
          %s352 = int_to_ptr.vmem [resolvable:$true] %s351
          %357 = dma.hbm_to_vmem [thread:$0]  %s350, 256, %s352, %s340, 128, 128, 8
        $region36: #{co_block.1} parent=31 // pred_fallthru
          _
        // Predicated region
        $region37: #{co_block.1} parent=31 // pred_check
          %p358 = pneg %p78
        $region38: #{co_block.1} parent=31 // pred_check_branch
          %360 = sbr.rel (%p358) target = $region40
        $region39: #{co_block.1} parent=31 // pred_region
          %s361 = sand.u32 %s32, 1
          %s362 = scalar_lea.sflag [#allocation6], %s361
          %s363 = sand.u32 %s68, 1
          %s364 = smul.addr %s363, 16
          %s365 = scalar_lea.vmem [#allocation5], %s364
          %367 = vsyncadd %s362, 0
          %s368 = smul.addr %s32, 2
          %s369 = smul.addr %s368, 8
          %s370 = scalar_lea.hbm %s1, %s369
          %s371 = sshll.u32 %s370, 4
          %s372 = int_to_ptr.hbm [resolvable:$true] %s371
          %s373 = sshll.u32 %s365, 4
          %s374 = int_to_ptr.vmem [resolvable:$true] %s373
          %379 = dma.hbm_to_vmem [thread:$0]  %s372, 256, %s374, %s362, 128, 128, 8
        $region40: #{co_block.1} parent=31 // pred_fallthru
          _
        // Predicated region
        $region41: #{co_block.1} parent=31 // pred_check
          %p380 = pneg %p104
        $region42: #{co_block.1} parent=31 // pred_check_branch
          %382 = sbr.rel (%p380) target = $region44
        $region43: #{co_block.1} parent=31 // pred_region
          %s383 = sand.u32 %s32, 1
          %s384 = scalar_lea.sflag [#allocation6], %s383
          %s385 = sand.u32 %s94, 1
          %s386 = smul.addr %s385, 8
          %s387 = scalar_lea.vmem [#allocation7], %s386
          %389 = vsyncadd %s384, 0
          %s390 = smul.addr %s32, 8
          %s391 = scalar_lea.hbm %s2, %s390
          %s393 = sshll.u32 %s391, 4
          %s394 = int_to_ptr.hbm [resolvable:$true] %s393
          %s395 = sshll.u32 %s387, 4
          %s396 = int_to_ptr.vmem [resolvable:$true] %s395
          %398 = dma.hbm_to_vmem [thread:$0]  %s394, 128, %s396, %s384
        $region44: #{co_block.1} parent=31 // pred_fallthru
          _
        // Predicated region
        $region45: #{co_block.1} parent=31 // pred_check
          %p399 = pneg %p130
        $region46: #{co_block.1} parent=31 // pred_check_branch
          %401 = sbr.rel (%p399) target = $region48
        $region47: #{co_block.1} parent=31 // pred_region
          %s402 = sand.u32 %s32, 1
          %s403 = scalar_lea.sflag [#allocation9], %s402
          %s404 = sand.u32 %s120, 1
          %s405 = smul.addr %s404, 8
          %s406 = scalar_lea.vmem [#allocation8], %s405
          %408 = vsyncadd %s403, 0
          %s409 = smul.addr %s32, 8
          %s410 = scalar_lea.hbm %s3, %s409
          %s412 = sshll.u32 %s410, 4
          %s413 = int_to_ptr.hbm [resolvable:$true] %s412
          %s414 = sshll.u32 %s406, 4
          %s415 = int_to_ptr.vmem [resolvable:$true] %s414
          %417 = dma.hbm_to_vmem [thread:$0]  %s413, 128, %s415, %s403
        $region48: #{co_block.1} parent=31 // pred_fallthru
          _
      $region32: #{co_block.1} parent=5 // pred_fallthru
        _
      %p418 = scmp.le.s32.totalorder 1, %s32
      %p419 = scmp.lt.s32.totalorder %s32, 3
      %p420 = pnand %p418, %p419
      %p421 = pneg %p420
      // Predicated region
      $region49: #{co_block.1} parent=5 // pred_check
        _
      $region50: #{co_block.1} parent=5 // pred_check_branch
        %423 = sbr.rel (%p420) target = $region52
      $region51: #{co_block.1} parent=5 // pred_region
        %s424 = ssub.s32 %s32, 1
        %s425 = sand.u32 %s45, 1
        %s426 = scalar_lea.sflag [#allocation3], %s425
        %s427 = sand.u32 %s45, 1
        %s428 = smul.addr %s427, 16
        %s429 = scalar_lea.vmem [#allocation2], %s428
        // Predicated region
        $region53: #{co_block.1} parent=51 // pred_check
          %p430 = pneg %p58
        $region54: #{co_block.1} parent=51 // pred_check_branch
          %432 = sbr.rel (%p430) target = $region56
        $region55: #{co_block.1} parent=51 // pred_region
          %434 = dma.done %s426, 256
        $region56: #{co_block.1} parent=51 // pred_fallthru
          _
        %s435 = sand.u32 %s37, 1
        %s436 = scalar_lea.sflag [#allocation6], %s435
        %s437 = sand.u32 %s71, 1
        %s438 = smul.addr %s437, 16
        %s439 = scalar_lea.vmem [#allocation5], %s438
        // Predicated region
        $region57: #{co_block.1} parent=51 // pred_check
          %p440 = pneg %p84
        $region58: #{co_block.1} parent=51 // pred_check_branch
          %442 = sbr.rel (%p440) target = $region60
        $region59: #{co_block.1} parent=51 // pred_region
          %444 = dma.done %s436, 256
        $region60: #{co_block.1} parent=51 // pred_fallthru
          _
        %s445 = sand.u32 %s37, 1
        %s446 = scalar_lea.sflag [#allocation6], %s445
        %s447 = sand.u32 %s97, 1
        %s448 = smul.addr %s447, 8
        %s449 = scalar_lea.vmem [#allocation7], %s448
        // Predicated region
        $region61: #{co_block.1} parent=51 // pred_check
          %p450 = pneg %p110
        $region62: #{co_block.1} parent=51 // pred_check_branch
          %452 = sbr.rel (%p450) target = $region64
        $region63: #{co_block.1} parent=51 // pred_region
          %454 = dma.done %s446, 128
        $region64: #{co_block.1} parent=51 // pred_fallthru
          _
        %s455 = sand.u32 %s37, 1
        %s456 = scalar_lea.sflag [#allocation9], %s455
        %s457 = sand.u32 %s123, 1
        %s458 = smul.addr %s457, 8
        %s459 = scalar_lea.vmem [#allocation8], %s458
        // Predicated region
        $region65: #{co_block.1} parent=51 // pred_check
          %p460 = pneg %p136
        $region66: #{co_block.1} parent=51 // pred_check_branch
          %462 = sbr.rel (%p460) target = $region68
        $region67: #{co_block.1} parent=51 // pred_region
          %464 = dma.done %s456, 128
        $region68: #{co_block.1} parent=51 // pred_fallthru
          _
        // Predicated region
        $region69: #{co_block.1} parent=51 // pred_check
          %p465 = pneg %p157
        $region70: #{co_block.1} parent=51 // pred_check_branch
          %467 = sbr.rel (%p465) target = $region72
        $region71: #{co_block.1} parent=51 // pred_region
          %469 = dma.done [#allocation9], 2048
        $region72: #{co_block.1} parent=51 // pred_fallthru
          _
        // Predicated region
        $region73: #{co_block.1} parent=51 // pred_check
          %p470 = pneg %p178
        $region74: #{co_block.1} parent=51 // pred_check_branch
          %472 = sbr.rel (%p470) target = $region76
        $region75: #{co_block.1} parent=51 // pred_region
          %474 = dma.done [#allocation12], 1024
        $region76: #{co_block.1} parent=51 // pred_fallthru
          _
        // Predicated region
        $region77: #{co_block.1} parent=51 // pred_check
          %p475 = pneg %p199
        $region78: #{co_block.1} parent=51 // pred_check_branch
          %477 = sbr.rel (%p475) target = $region80
        $region79: #{co_block.1} parent=51 // pred_region
          %479 = dma.done [#allocation12], 2048
        $region80: #{co_block.1} parent=51 // pred_fallthru
          _
        %s480 = sand.u32 %s45, 1
        %s481 = scalar_lea.sflag [#allocation3], %s480
        %s482 = sand.u32 %s45, 1
        %s483 = smul.addr %s482, 16
        %s484 = scalar_lea.vmem [#allocation2], %s483
        %p485 = pneg %p58
        %p486 = pneg %p55
        %s487 = sand.u32 %s37, 1
        %s488 = scalar_lea.sflag [#allocation6], %s487
        %s489 = sand.u32 %s71, 1
        %s490 = smul.addr %s489, 16
        %s491 = scalar_lea.vmem [#allocation5], %s490
        %p492 = pneg %p84
        %p493 = pneg %p81
        %s494 = sand.u32 %s37, 1
        %s495 = scalar_lea.sflag [#allocation6], %s494
        %s496 = sand.u32 %s97, 1
        %s497 = smul.addr %s496, 8
        %s498 = scalar_lea.vmem [#allocation7], %s497
        %p499 = pneg %p110
        %p500 = pneg %p107
        %s501 = sand.u32 %s37, 1
        %s502 = scalar_lea.sflag [#allocation9], %s501
        %s503 = sand.u32 %s123, 1
        %s504 = smul.addr %s503, 8
        %s505 = scalar_lea.vmem [#allocation8], %s504
        %p506 = pneg %p136
        %p507 = pneg %p133
        %p508 = pneg %p157
        %p509 = pneg %p154
        %p510 = pneg %p178
        %p511 = pneg %p175
        %p512 = pneg %p199
        %p513 = pneg %p196
        %p514 = pneg %p220
        %p515 = pneg %p217
        %p516 = pneg %p246
        %p517 = pneg %p243
        %s518 = sand.u32 %s233, 1
        %s519 = scalar_lea.sflag [#allocation4], %s518
        %s520 = sand.u32 %s233, 1
        %s521 = smul.addr %s520, 16
        %s522 = scalar_lea.vmem [#allocation14], %s521
        %p523 = pneg %p272
        %p524 = pneg %p269
        %s525 = sand.u32 %s259, 1
        %s526 = scalar_lea.sflag [#allocation16], %s525
        %s527 = sand.u32 %s259, 1
        %s528 = smul.addr %s527, 8
        %s529 = scalar_lea.vmem [#allocation15], %s528
        %v530 = vld [vmem:[%s429] sm:$0xff]
        %v531 = vld [vmem:[%s429 + $0x8] sm:$0xff]
        %v532 = vld [vmem:[%s449] sm:$0xff]
        %v533 = vld [vmem:[%s439] sm:$0xff]
        %v534 = vld [vmem:[%s439 + $0x8] sm:$0xff]
        %v535 = vadd.f32 %v530, %v533
        %v536 = vadd.f32 %v531, %v534
        %v537 = vld [vmem:[%s459] sm:$0xff]
        %v538 = vadd.f32 %v532, %v537
        %v539 = vld [vmem:[#allocation10] sm:$0xff]
        %v540 = vld [vmem:[#allocation10 + $0x8] sm:$0xff]
        %v541 = vld [vmem:[#allocation10 + $0x10] sm:$0xff]
        %v542 = vld [vmem:[#allocation10 + $0x18] sm:$0xff]
        %vm543 = vcmask 261120
        %v545 = vsel %vm543, %v539, 0
        %v548 = vsel %vm543, %v540, 0
        %v551 = vsel %vm543, %v541, 0
        %v554 = vsel %vm543, %v542, 0
        %v557 = vsel %vm543, %v535, 0
        %v560 = vsel %vm543, %v536, 0
        %562 = vmatpush.xpose.msra.mxu0 0.0
        %563 = vmatpush.xpose.msra.mxu0 0.0
        %564 = vmatpush.xpose.msra.mxu0 0.0
        %565 = vmatpush.xpose.msra.mxu0 0.0
        %566 = vmatpush.xpose.msra.mxu0 0.0
        %567 = vmatpush.xpose.msra.mxu0 0.0
        %568 = vmatpush.xpose.msra.mxu0 0.0
        %569 = vmatpush.xpose.msra.mxu0 0.0
        %570 = vmatpush.xpose.msra.mxu0 0.0
        %571 = vmatpush.xpose.msra.mxu0 0.0
        %572 = vmatpush.xpose.msra.mxu0 0.0
        %573 = vmatpush.xpose.msra.mxu0 0.0
        %574 = vmatpush.xpose.msra.mxu0 0.0
        %575 = vmatpush.xpose.msra.mxu0 0.0
        %576 = vmatpush.xpose.msra.mxu0 %v560
        %577 = vmatpush.xpose.msra.mxu0 %v557
        %578 = vmatmul.f32.gmra.mxu0 %v545
        %v579 = vpop.f32.mrf.mxu0
        %v580 = vadd.f32 0.0, %v579
        %581 = vmatmul.f32.gmra.mxu0 %v548
        %v582 = vpop.f32.mrf.mxu0
        %v583 = vadd.f32 0.0, %v582
        %584 = vmatmul.f32.gmra.mxu0 %v551
        %v585 = vpop.f32.mrf.mxu0
        %v586 = vadd.f32 0.0, %v585
        %587 = vmatmul.f32.gmra.mxu0 %v554
        %v588 = vpop.f32.mrf.mxu0
        %v589 = vadd.f32 0.0, %v588
        %590 = vdwg.mxu0
        %s591 = scalar_lea.vmem [#allocation10], 32
        %v592 = vld [vmem:[%s591] sm:$0xff]
        %v593 = vld [vmem:[%s591 + $0x8] sm:$0xff]
        %v594 = vld [vmem:[%s591 + $0x10] sm:$0xff]
        %v595 = vld [vmem:[%s591 + $0x18] sm:$0xff]
        %v597 = vsel %vm543, %v592, 0
        %v600 = vsel %vm543, %v593, 0
        %v603 = vsel %vm543, %v594, 0
        %v606 = vsel %vm543, %v595, 0
        %v609 = vsel %vm543, %v538, 0
        %611 = vmatpush.xpose.msra.mxu0 0.0
        %612 = vmatpush.xpose.msra.mxu0 0.0
        %613 = vmatpush.xpose.msra.mxu0 0.0
        %614 = vmatpush.xpose.msra.mxu0 0.0
        %615 = vmatpush.xpose.msra.mxu0 0.0
        %616 = vmatpush.xpose.msra.mxu0 0.0
        %617 = vmatpush.xpose.msra.mxu0 0.0
        %618 = vmatpush.xpose.msra.mxu0 0.0
        %619 = vmatpush.xpose.msra.mxu0 0.0
        %620 = vmatpush.xpose.msra.mxu0 0.0
        %621 = vmatpush.xpose.msra.mxu0 0.0
        %622 = vmatpush.xpose.msra.mxu0 0.0
        %623 = vmatpush.xpose.msra.mxu0 0.0
        %624 = vmatpush.xpose.msra.mxu0 0.0
        %625 = vmatpush.xpose.msra.mxu0 0.0
        %626 = vmatpush.xpose.msra.mxu0 %v609
        %627 = vmatmul.f32.gmra.mxu0 %v597
        %v628 = vpop.f32.mrf.mxu0
        %v629 = vadd.f32 0.0, %v628
        %630 = vmatmul.f32.gmra.mxu0 %v600
        %v631 = vpop.f32.mrf.mxu0
        %v632 = vadd.f32 0.0, %v631
        %633 = vmatmul.f32.gmra.mxu0 %v603
        %v634 = vpop.f32.mrf.mxu0
        %v635 = vadd.f32 0.0, %v634
        %636 = vmatmul.f32.gmra.mxu0 %v606
        %v637 = vpop.f32.mrf.mxu0
        %v638 = vadd.f32 0.0, %v637
        %639 = vdwg.mxu0
        %s640 = scalar_lea.vmem [#allocation10], 64
        %v641 = vld [vmem:[%s640] sm:$0xff]
        %v642 = vld [vmem:[%s640 + $0x8] sm:$0xff]
        %v643 = vld [vmem:[%s640 + $0x10] sm:$0xff]
        %v644 = vld [vmem:[%s640 + $0x18] sm:$0xff]
        %v646 = vsel %vm543, %v641, 0
        %v649 = vsel %vm543, %v642, 0
        %v652 = vsel %vm543, %v643, 0
        %v655 = vsel %vm543, %v644, 0
        %v658 = vsel %vm543, %v530, 0
        %v661 = vsel %vm543, %v531, 0
        %663 = vmatpush.xpose.msra.mxu0 0.0
        %664 = vmatpush.xpose.msra.mxu0 0.0
        %665 = vmatpush.xpose.msra.mxu0 0.0
        %666 = vmatpush.xpose.msra.mxu0 0.0
        %667 = vmatpush.xpose.msra.mxu0 0.0
        %668 = vmatpush.xpose.msra.mxu0 0.0
        %669 = vmatpush.xpose.msra.mxu0 0.0
        %670 = vmatpush.xpose.msra.mxu0 0.0
        %671 = vmatpush.xpose.msra.mxu0 0.0
        %672 = vmatpush.xpose.msra.mxu0 0.0
        %673 = vmatpush.xpose.msra.mxu0 0.0
        %674 = vmatpush.xpose.msra.mxu0 0.0
        %675 = vmatpush.xpose.msra.mxu0 0.0
        %676 = vmatpush.xpose.msra.mxu0 0.0
        %677 = vmatpush.xpose.msra.mxu0 %v661
        %678 = vmatpush.xpose.msra.mxu0 %v658
        %679 = vmatmul.f32.gmra.mxu0 %v646
        %v680 = vpop.f32.mrf.mxu0
        %v681 = vadd.f32 0.0, %v680
        %682 = vmatmul.f32.gmra.mxu0 %v649
        %v683 = vpop.f32.mrf.mxu0
        %v684 = vadd.f32 0.0, %v683
        %685 = vmatmul.f32.gmra.mxu0 %v652
        %v686 = vpop.f32.mrf.mxu0
        %v687 = vadd.f32 0.0, %v686
        %688 = vmatmul.f32.gmra.mxu0 %v655
        %v689 = vpop.f32.mrf.mxu0
        %v690 = vadd.f32 0.0, %v689
        %691 = vdwg.mxu0
        %s692 = scalar_lea.vmem [#allocation10], 96
        %v693 = vld [vmem:[%s692] sm:$0xff]
        %v694 = vld [vmem:[%s692 + $0x8] sm:$0xff]
        %v695 = vld [vmem:[%s692 + $0x10] sm:$0xff]
        %v696 = vld [vmem:[%s692 + $0x18] sm:$0xff]
        %v698 = vsel %vm543, %v693, 0
        %v701 = vsel %vm543, %v694, 0
        %v704 = vsel %vm543, %v695, 0
        %v707 = vsel %vm543, %v696, 0
        %v710 = vsel %vm543, %v532, 0
        %712 = vmatpush.xpose.msra.mxu0 0.0
        %713 = vmatpush.xpose.msra.mxu0 0.0
        %714 = vmatpush.xpose.msra.mxu0 0.0
        %715 = vmatpush.xpose.msra.mxu0 0.0
        %716 = vmatpush.xpose.msra.mxu0 0.0
        %717 = vmatpush.xpose.msra.mxu0 0.0
        %718 = vmatpush.xpose.msra.mxu0 0.0
        %719 = vmatpush.xpose.msra.mxu0 0.0
        %720 = vmatpush.xpose.msra.mxu0 0.0
        %721 = vmatpush.xpose.msra.mxu0 0.0
        %722 = vmatpush.xpose.msra.mxu0 0.0
        %723 = vmatpush.xpose.msra.mxu0 0.0
        %724 = vmatpush.xpose.msra.mxu0 0.0
        %725 = vmatpush.xpose.msra.mxu0 0.0
        %726 = vmatpush.xpose.msra.mxu0 0.0
        %727 = vmatpush.xpose.msra.mxu0 %v710
        %728 = vmatmul.f32.gmra.mxu0 %v698
        %v729 = vpop.f32.mrf.mxu0
        %v730 = vadd.f32 0.0, %v729
        %731 = vmatmul.f32.gmra.mxu0 %v701
        %v732 = vpop.f32.mrf.mxu0
        %v733 = vadd.f32 0.0, %v732
        %734 = vmatmul.f32.gmra.mxu0 %v704
        %v735 = vpop.f32.mrf.mxu0
        %v736 = vadd.f32 0.0, %v735
        %737 = vmatmul.f32.gmra.mxu0 %v707
        %v738 = vpop.f32.mrf.mxu0
        %v739 = vadd.f32 0.0, %v738
        %740 = vdwg.mxu0
        %741 = vxpose.xlu0.b32.start [1/16] %v580, 128
        %742 = vxpose.xlu0.b32.cont [2/16] 0.0, 128
        %743 = vxpose.xlu0.b32.cont [3/16] 0.0, 128
        %744 = vxpose.xlu0.b32.cont [4/16] 0.0, 128
        %745 = vxpose.xlu0.b32.cont [5/16] 0.0, 128
        %746 = vxpose.xlu0.b32.cont [6/16] 0.0, 128
        %747 = vxpose.xlu0.b32.cont [7/16] 0.0, 128
        %748 = vxpose.xlu0.b32.cont [8/16] 0.0, 128
        %749 = vxpose.xlu0.b32.cont [9/16] 0.0, 128
        %750 = vxpose.xlu0.b32.cont [10/16] 0.0, 128
        %751 = vxpose.xlu0.b32.cont [11/16] 0.0, 128
        %752 = vxpose.xlu0.b32.cont [12/16] 0.0, 128
        %753 = vxpose.xlu0.b32.cont [13/16] 0.0, 128
        %754 = vxpose.xlu0.b32.cont [14/16] 0.0, 128
        %755 = vxpose.xlu0.b32.cont [15/16] 0.0, 128
        %756 = vxpose.xlu0.b32.end [16/16] 0.0, 128
        %v757 = vpop.trf.xlu0
        %v758 = vpop.trf.xlu0
        %v759 = vpop.trf.xlu0
        %v760 = vpop.trf.xlu0
        %v761 = vpop.trf.xlu0
        %v762 = vpop.trf.xlu0
        %v763 = vpop.trf.xlu0
        %v764 = vpop.trf.xlu0
        %v765 = vpop.trf.xlu0
        %v766 = vpop.trf.xlu0
        %v767 = vpop.trf.xlu0
        %v768 = vpop.trf.xlu0
        %v769 = vpop.trf.xlu0
        %v770 = vpop.trf.xlu0
        %v771 = vpop.trf.xlu0
        %v772 = vpop.trf.xlu0
        %vm773 = vcmask 64512
        %v775 = vsel %vm773, %v757, 0
        %v778 = vsel %vm773, %v758, 0
        %780 = vmatpush.msra.mxu0 0.0
        %781 = vmatpush.msra.mxu0 0.0
        %782 = vmatpush.msra.mxu0 0.0
        %783 = vmatpush.msra.mxu0 0.0
        %784 = vmatpush.msra.mxu0 0.0
        %785 = vmatpush.msra.mxu0 0.0
        %786 = vmatpush.msra.mxu0 0.0
        %787 = vmatpush.msra.mxu0 0.0
        %788 = vmatpush.msra.mxu0 0.0
        %789 = vmatpush.msra.mxu0 0.0
        %790 = vmatpush.msra.mxu0 0.0
        %791 = vmatpush.msra.mxu0 0.0
        %792 = vmatpush.msra.mxu0 0.0
        %793 = vmatpush.msra.mxu0 0.0
        %794 = vmatpush.msra.mxu0 0.0
        %795 = vmatpush.msra.mxu0 %v629
        %796 = vmatmul.f32.gmra.mxu0 %v775
        %v797 = vpop.f32.mrf.mxu0
        %v798 = vadd.f32 0.0, %v797
        %799 = vmatmul.f32.gmra.mxu0 %v778
        %v800 = vpop.f32.mrf.mxu0
        %v801 = vadd.f32 0.0, %v800
        %802 = vdwg.mxu0
        %803 = vxpose.xlu0.b32.start [1/16] %v583, 128
        %804 = vxpose.xlu0.b32.cont [2/16] 0.0, 128
        %805 = vxpose.xlu0.b32.cont [3/16] 0.0, 128
        %806 = vxpose.xlu0.b32.cont [4/16] 0.0, 128
        %807 = vxpose.xlu0.b32.cont [5/16] 0.0, 128
        %808 = vxpose.xlu0.b32.cont [6/16] 0.0, 128
        %809 = vxpose.xlu0.b32.cont [7/16] 0.0, 128
        %810 = vxpose.xlu0.b32.cont [8/16] 0.0, 128
        %811 = vxpose.xlu0.b32.cont [9/16] 0.0, 128
        %812 = vxpose.xlu0.b32.cont [10/16] 0.0, 128
        %813 = vxpose.xlu0.b32.cont [11/16] 0.0, 128
        %814 = vxpose.xlu0.b32.cont [12/16] 0.0, 128
        %815 = vxpose.xlu0.b32.cont [13/16] 0.0, 128
        %816 = vxpose.xlu0.b32.cont [14/16] 0.0, 128
        %817 = vxpose.xlu0.b32.cont [15/16] 0.0, 128
        %818 = vxpose.xlu0.b32.end [16/16] 0.0, 128
        %v819 = vpop.trf.xlu0
        %v820 = vpop.trf.xlu0
        %v821 = vpop.trf.xlu0
        %v822 = vpop.trf.xlu0
        %v823 = vpop.trf.xlu0
        %v824 = vpop.trf.xlu0
        %v825 = vpop.trf.xlu0
        %v826 = vpop.trf.xlu0
        %v827 = vpop.trf.xlu0
        %v828 = vpop.trf.xlu0
        %v829 = vpop.trf.xlu0
        %v830 = vpop.trf.xlu0
        %v831 = vpop.trf.xlu0
        %v832 = vpop.trf.xlu0
        %v833 = vpop.trf.xlu0
        %v834 = vpop.trf.xlu0
        %v836 = vsel %vm773, %v819, 0
        %v839 = vsel %vm773, %v820, 0
        %841 = vmatpush.msra.mxu0 0.0
        %842 = vmatpush.msra.mxu0 0.0
        %843 = vmatpush.msra.mxu0 0.0
        %844 = vmatpush.msra.mxu0 0.0
        %845 = vmatpush.msra.mxu0 0.0
        %846 = vmatpush.msra.mxu0 0.0
        %847 = vmatpush.msra.mxu0 0.0
        %848 = vmatpush.msra.mxu0 0.0
        %849 = vmatpush.msra.mxu0 0.0
        %850 = vmatpush.msra.mxu0 0.0
        %851 = vmatpush.msra.mxu0 0.0
        %852 = vmatpush.msra.mxu0 0.0
        %853 = vmatpush.msra.mxu0 0.0
        %854 = vmatpush.msra.mxu0 0.0
        %855 = vmatpush.msra.mxu0 0.0
        %856 = vmatpush.msra.mxu0 %v632
        %857 = vmatmul.f32.gmra.mxu0 %v836
        %v858 = vpop.f32.mrf.mxu0
        %v859 = vadd.f32 0.0, %v858
        %860 = vmatmul.f32.gmra.mxu0 %v839
        %v861 = vpop.f32.mrf.mxu0
        %v862 = vadd.f32 0.0, %v861
        %863 = vdwg.mxu0
        %864 = vxpose.xlu0.b32.start [1/16] %v586, 128
        %865 = vxpose.xlu0.b32.cont [2/16] 0.0, 128
        %866 = vxpose.xlu0.b32.cont [3/16] 0.0, 128
        %867 = vxpose.xlu0.b32.cont [4/16] 0.0, 128
        %868 = vxpose.xlu0.b32.cont [5/16] 0.0, 128
        %869 = vxpose.xlu0.b32.cont [6/16] 0.0, 128
        %870 = vxpose.xlu0.b32.cont [7/16] 0.0, 128
        %871 = vxpose.xlu0.b32.cont [8/16] 0.0, 128
        %872 = vxpose.xlu0.b32.cont [9/16] 0.0, 128
        %873 = vxpose.xlu0.b32.cont [10/16] 0.0, 128
        %874 = vxpose.xlu0.b32.cont [11/16] 0.0, 128
        %875 = vxpose.xlu0.b32.cont [12/16] 0.0, 128
        %876 = vxpose.xlu0.b32.cont [13/16] 0.0, 128
        %877 = vxpose.xlu0.b32.cont [14/16] 0.0, 128
        %878 = vxpose.xlu0.b32.cont [15/16] 0.0, 128
        %879 = vxpose.xlu0.b32.end [16/16] 0.0, 128
        %v880 = vpop.trf.xlu0
        %v881 = vpop.trf.xlu0
        %v882 = vpop.trf.xlu0
        %v883 = vpop.trf.xlu0
        %v884 = vpop.trf.xlu0
        %v885 = vpop.trf.xlu0
        %v886 = vpop.trf.xlu0
        %v887 = vpop.trf.xlu0
        %v888 = vpop.trf.xlu0
        %v889 = vpop.trf.xlu0
        %v890 = vpop.trf.xlu0
        %v891 = vpop.trf.xlu0
        %v892 = vpop.trf.xlu0
        %v893 = vpop.trf.xlu0
        %v894 = vpop.trf.xlu0
        %v895 = vpop.trf.xlu0
        %v897 = vsel %vm773, %v880, 0
        %v900 = vsel %vm773, %v881, 0
        %902 = vmatpush.msra.mxu0 0.0
        %903 = vmatpush.msra.mxu0 0.0
        %904 = vmatpush.msra.mxu0 0.0
        %905 = vmatpush.msra.mxu0 0.0
        %906 = vmatpush.msra.mxu0 0.0
        %907 = vmatpush.msra.mxu0 0.0
        %908 = vmatpush.msra.mxu0 0.0
        %909 = vmatpush.msra.mxu0 0.0
        %910 = vmatpush.msra.mxu0 0.0
        %911 = vmatpush.msra.mxu0 0.0
        %912 = vmatpush.msra.mxu0 0.0
        %913 = vmatpush.msra.mxu0 0.0
        %914 = vmatpush.msra.mxu0 0.0
        %915 = vmatpush.msra.mxu0 0.0
        %916 = vmatpush.msra.mxu0 0.0
        %917 = vmatpush.msra.mxu0 %v635
        %918 = vmatmul.f32.gmra.mxu0 %v897
        %v919 = vpop.f32.mrf.mxu0
        %v920 = vadd.f32 0.0, %v919
        %921 = vmatmul.f32.gmra.mxu0 %v900
        %v922 = vpop.f32.mrf.mxu0
        %v923 = vadd.f32 0.0, %v922
        %924 = vdwg.mxu0
        %925 = vxpose.xlu0.b32.start [1/16] %v589, 128
        %926 = vxpose.xlu0.b32.cont [2/16] 0.0, 128
        %927 = vxpose.xlu0.b32.cont [3/16] 0.0, 128
        %928 = vxpose.xlu0.b32.cont [4/16] 0.0, 128
        %929 = vxpose.xlu0.b32.cont [5/16] 0.0, 128
        %930 = vxpose.xlu0.b32.cont [6/16] 0.0, 128
        %931 = vxpose.xlu0.b32.cont [7/16] 0.0, 128
        %932 = vxpose.xlu0.b32.cont [8/16] 0.0, 128
        %933 = vxpose.xlu0.b32.cont [9/16] 0.0, 128
        %934 = vxpose.xlu0.b32.cont [10/16] 0.0, 128
        %935 = vxpose.xlu0.b32.cont [11/16] 0.0, 128
        %936 = vxpose.xlu0.b32.cont [12/16] 0.0, 128
        %937 = vxpose.xlu0.b32.cont [13/16] 0.0, 128
        %938 = vxpose.xlu0.b32.cont [14/16] 0.0, 128
        %939 = vxpose.xlu0.b32.cont [15/16] 0.0, 128
        %940 = vxpose.xlu0.b32.end [16/16] 0.0, 128
        %v941 = vpop.trf.xlu0
        %v942 = vpop.trf.xlu0
        %v943 = vpop.trf.xlu0
        %v944 = vpop.trf.xlu0
        %v945 = vpop.trf.xlu0
        %v946 = vpop.trf.xlu0
        %v947 = vpop.trf.xlu0
        %v948 = vpop.trf.xlu0
        %v949 = vpop.trf.xlu0
        %v950 = vpop.trf.xlu0
        %v951 = vpop.trf.xlu0
        %v952 = vpop.trf.xlu0
        %v953 = vpop.trf.xlu0
        %v954 = vpop.trf.xlu0
        %v955 = vpop.trf.xlu0
        %v956 = vpop.trf.xlu0
        %v958 = vsel %vm773, %v941, 0
        %v961 = vsel %vm773, %v942, 0
        %963 = vmatpush.msra.mxu0 0.0
        %964 = vmatpush.msra.mxu0 0.0
        %965 = vmatpush.msra.mxu0 0.0
        %966 = vmatpush.msra.mxu0 0.0
        %967 = vmatpush.msra.mxu0 0.0
        %968 = vmatpush.msra.mxu0 0.0
        %969 = vmatpush.msra.mxu0 0.0
        %970 = vmatpush.msra.mxu0 0.0
        %971 = vmatpush.msra.mxu0 0.0
        %972 = vmatpush.msra.mxu0 0.0
        %973 = vmatpush.msra.mxu0 0.0
        %974 = vmatpush.msra.mxu0 0.0
        %975 = vmatpush.msra.mxu0 0.0
        %976 = vmatpush.msra.mxu0 0.0
        %977 = vmatpush.msra.mxu0 0.0
        %978 = vmatpush.msra.mxu0 %v638
        %979 = vmatmul.f32.gmra.mxu0 %v958
        %v980 = vpop.f32.mrf.mxu0
        %v981 = vadd.f32 0.0, %v980
        %982 = vmatmul.f32.gmra.mxu0 %v961
        %v983 = vpop.f32.mrf.mxu0
        %v984 = vadd.f32 0.0, %v983
        %985 = vdwg.mxu0
        %v986 = vmul.f32 %v798, 0.35355338
        %v987 = vmul.f32 %v801, 0.35355338
        %v988 = vmul.f32 %v859, 0.35355338
        %v989 = vmul.f32 %v862, 0.35355338
        %v990 = vmul.f32 %v920, 0.35355338
        %v991 = vmul.f32 %v923, 0.35355338
        %v992 = vmul.f32 %v981, 0.35355338
        %v993 = vmul.f32 %v984, 0.35355338
        %v994 = vsel %vm773, %v986, -inf
        %v995 = vsel %vm773, %v987, -inf
        %v996 = vmax.f32 %v994, %v995
        %v997 = vrot.slane %v996, 4
        %v998 = vmax.f32 %v996, %v997
        %v999 = vrot.slane %v998, 2
        %v1000 = vmax.f32 %v998, %v999
        %v1001 = vrot.slane %v1000, 1
        %v1002 = vmax.f32 %v1000, %v1001
        %v1003 = vsel %vm773, %v988, -inf
        %v1004 = vsel %vm773, %v989, -inf
        %v1005 = vmax.f32 %v1003, %v1004
        %v1006 = vrot.slane %v1005, 4
        %v1007 = vmax.f32 %v1005, %v1006
        %v1008 = vrot.slane %v1007, 2
        %v1009 = vmax.f32 %v1007, %v1008
        %v1010 = vrot.slane %v1009, 1
        %v1011 = vmax.f32 %v1009, %v1010
        %v1012 = vsel %vm773, %v990, -inf
        %v1013 = vsel %vm773, %v991, -inf
        %v1014 = vmax.f32 %v1012, %v1013
        %v1015 = vrot.slane %v1014, 4
        %v1016 = vmax.f32 %v1014, %v1015
        %v1017 = vrot.slane %v1016, 2
        %v1018 = vmax.f32 %v1016, %v1017
        %v1019 = vrot.slane %v1018, 1
        %v1020 = vmax.f32 %v1018, %v1019
        %v1021 = vsel %vm773, %v992, -inf
        %v1022 = vsel %vm773, %v993, -inf
        %v1023 = vmax.f32 %v1021, %v1022
        %v1024 = vrot.slane %v1023, 4
        %v1025 = vmax.f32 %v1023, %v1024
        %v1026 = vrot.slane %v1025, 2
        %v1027 = vmax.f32 %v1025, %v1026
        %v1028 = vrot.slane %v1027, 1
        %v1029 = vmax.f32 %v1027, %v1028
        %v1030 = vsub.f32 %v986, %v1002
        %v1031 = vsub.f32 %v987, %v1002
        %v1032 = vsub.f32 %v988, %v1011
        %v1033 = vsub.f32 %v989, %v1011
        %v1034 = vsub.f32 %v990, %v1020
        %v1035 = vsub.f32 %v991, %v1020
        %v1036 = vsub.f32 %v992, %v1029
        %v1037 = vsub.f32 %v993, %v1029
        %v1038 = vmul.f32 %v1030, 1.442695
        %v1039 = vpow.pop %v1038
        %v1040 = vmul.f32 %v1031, 1.442695
        %v1041 = vpow.pop %v1040
        %v1042 = vmul.f32 %v1032, 1.442695
        %v1043 = vpow.pop %v1042
        %v1044 = vmul.f32 %v1033, 1.442695
        %v1045 = vpow.pop %v1044
        %v1046 = vmul.f32 %v1034, 1.442695
        %v1047 = vpow.pop %v1046
        %v1048 = vmul.f32 %v1035, 1.442695
        %v1049 = vpow.pop %v1048
        %v1050 = vmul.f32 %v1036, 1.442695
        %v1051 = vpow.pop %v1050
        %v1052 = vmul.f32 %v1037, 1.442695
        %v1053 = vpow.pop %v1052
        %1054 = vmax.xlane.f32.xlu0 %v994
        %v1055 = vpop.xlane.xlu0 %1054
        %1056 = vmax.xlane.f32.xlu0 %v995
        %v1057 = vpop.xlane.xlu0 %1056
        %1058 = vmax.xlane.f32.xlu0 %v1003
        %v1059 = vpop.xlane.xlu0 %1058
        %1060 = vmax.xlane.f32.xlu0 %v1004
        %v1061 = vpop.xlane.xlu0 %1060
        %1062 = vmax.xlane.f32.xlu0 %v1012
        %v1063 = vpop.xlane.xlu0 %1062
        %1064 = vmax.xlane.f32.xlu0 %v1013
        %v1065 = vpop.xlane.xlu0 %1064
        %1066 = vmax.xlane.f32.xlu0 %v1021
        %v1067 = vpop.xlane.xlu0 %1066
        %1068 = vmax.xlane.f32.xlu0 %v1022
        %v1069 = vpop.xlane.xlu0 %1068
        %v1070 = vsub.f32 %v986, %v1055
        %v1071 = vsub.f32 %v987, %v1057
        %v1072 = vsub.f32 %v988, %v1059
        %v1073 = vsub.f32 %v989, %v1061
        %v1074 = vsub.f32 %v990, %v1063
        %v1075 = vsub.f32 %v991, %v1065
        %v1076 = vsub.f32 %v992, %v1067
        %v1077 = vsub.f32 %v993, %v1069
        %v1078 = vmul.f32 %v1070, 1.442695
        %v1079 = vpow.pop %v1078
        %v1080 = vmul.f32 %v1071, 1.442695
        %v1081 = vpow.pop %v1080
        %v1082 = vmul.f32 %v1072, 1.442695
        %v1083 = vpow.pop %v1082
        %v1084 = vmul.f32 %v1073, 1.442695
        %v1085 = vpow.pop %v1084
        %v1086 = vmul.f32 %v1074, 1.442695
        %v1087 = vpow.pop %v1086
        %v1088 = vmul.f32 %v1075, 1.442695
        %v1089 = vpow.pop %v1088
        %v1090 = vmul.f32 %v1076, 1.442695
        %v1091 = vpow.pop %v1090
        %v1092 = vmul.f32 %v1077, 1.442695
        %v1093 = vpow.pop %v1092
        %v1094 = vsel %vm773, %v1039, 0.0
        %v1095 = vsel %vm773, %v1041, 0.0
        %v1096 = vadd.f32 %v1094, %v1095
        %v1097 = vrot.slane %v1096, 4
        %v1098 = vadd.f32 %v1096, %v1097
        %v1099 = vrot.slane %v1098, 2
        %v1100 = vadd.f32 %v1098, %v1099
        %v1101 = vrot.slane %v1100, 1
        %v1102 = vadd.f32 %v1100, %v1101
        %v1103 = vsel %vm773, %v1043, 0.0
        %v1104 = vsel %vm773, %v1045, 0.0
        %v1105 = vadd.f32 %v1103, %v1104
        %v1106 = vrot.slane %v1105, 4
        %v1107 = vadd.f32 %v1105, %v1106
        %v1108 = vrot.slane %v1107, 2
        %v1109 = vadd.f32 %v1107, %v1108
        %v1110 = vrot.slane %v1109, 1
        %v1111 = vadd.f32 %v1109, %v1110
        %v1112 = vsel %vm773, %v1047, 0.0
        %v1113 = vsel %vm773, %v1049, 0.0
        %v1114 = vadd.f32 %v1112, %v1113
        %v1115 = vrot.slane %v1114, 4
        %v1116 = vadd.f32 %v1114, %v1115
        %v1117 = vrot.slane %v1116, 2
        %v1118 = vadd.f32 %v1116, %v1117
        %v1119 = vrot.slane %v1118, 1
        %v1120 = vadd.f32 %v1118, %v1119
        %v1121 = vsel %vm773, %v1051, 0.0
        %v1122 = vsel %vm773, %v1053, 0.0
        %v1123 = vadd.f32 %v1121, %v1122
        %v1124 = vrot.slane %v1123, 4
        %v1125 = vadd.f32 %v1123, %v1124
        %v1126 = vrot.slane %v1125, 2
        %v1127 = vadd.f32 %v1125, %v1126
        %v1128 = vrot.slane %v1127, 1
        %v1129 = vadd.f32 %v1127, %v1128
        %v1130 = vrcp.pop %v1102
        %v1131 = vmul.f32 %v1102, %v1130
        %v1132 = vsub.f32 1.0, %v1131
        %v1133 = vmul.f32 %v1130, %v1132
        %v1134 = vadd.f32 %v1130, %v1133
        %vm1135 = vweird.f32 %v1102
        %vm1136 = vweird.f32 %v1130
        %vm1137 = vmor %vm1135, %vm1136
        %v1138 = vsel %vm1137, %v1130, %v1134
        %v1139 = vand.u32 2147483647, %v1102
        %vm1140 = vcmp.eq.f32.partialorder %v1139, 8.507059e+37
        %v1141 = vand.u32 %v1102, 2147483648
        %v1142 = vor.u32 1.1754944e-38, %v1141
        %v1143 = vsel %vm1140, %v1142, %v1138
        %v1144 = vrcp.pop %v1111
        %v1145 = vmul.f32 %v1111, %v1144
        %v1146 = vsub.f32 1.0, %v1145
        %v1147 = vmul.f32 %v1144, %v1146
        %v1148 = vadd.f32 %v1144, %v1147
        %vm1149 = vweird.f32 %v1111
        %vm1150 = vweird.f32 %v1144
        %vm1151 = vmor %vm1149, %vm1150
        %v1152 = vsel %vm1151, %v1144, %v1148
        %v1153 = vand.u32 2147483647, %v1111
        %vm1154 = vcmp.eq.f32.partialorder %v1153, 8.507059e+37
        %v1155 = vand.u32 %v1111, 2147483648
        %v1156 = vor.u32 1.1754944e-38, %v1155
        %v1157 = vsel %vm1154, %v1156, %v1152
        %v1158 = vrcp.pop %v1120
        %v1159 = vmul.f32 %v1120, %v1158
        %v1160 = vsub.f32 1.0, %v1159
        %v1161 = vmul.f32 %v1158, %v1160
        %v1162 = vadd.f32 %v1158, %v1161
        %vm1163 = vweird.f32 %v1120
        %vm1164 = vweird.f32 %v1158
        %vm1165 = vmor %vm1163, %vm1164
        %v1166 = vsel %vm1165, %v1158, %v1162
        %v1167 = vand.u32 2147483647, %v1120
        %vm1168 = vcmp.eq.f32.partialorder %v1167, 8.507059e+37
        %v1169 = vand.u32 %v1120, 2147483648
        %v1170 = vor.u32 1.1754944e-38, %v1169
        %v1171 = vsel %vm1168, %v1170, %v1166
        %v1172 = vrcp.pop %v1129
        %v1173 = vmul.f32 %v1129, %v1172
        %v1174 = vsub.f32 1.0, %v1173
        %v1175 = vmul.f32 %v1172, %v1174
        %v1176 = vadd.f32 %v1172, %v1175
        %vm1177 = vweird.f32 %v1129
        %vm1178 = vweird.f32 %v1172
        %vm1179 = vmor %vm1177, %vm1178
        %v1180 = vsel %vm1179, %v1172, %v1176
        %v1181 = vand.u32 2147483647, %v1129
        %vm1182 = vcmp.eq.f32.partialorder %v1181, 8.507059e+37
        %v1183 = vand.u32 %v1129, 2147483648
        %v1184 = vor.u32 1.1754944e-38, %v1183
        %v1185 = vsel %vm1182, %v1184, %v1180
        %v1186 = vmul.f32 %v1039, %v1143
        %v1187 = vmul.f32 %v1041, %v1143
        %v1188 = vmul.f32 %v1043, %v1157
        %v1189 = vmul.f32 %v1045, %v1157
        %v1190 = vmul.f32 %v1047, %v1171
        %v1191 = vmul.f32 %v1049, %v1171
        %v1192 = vmul.f32 %v1051, %v1185
        %v1193 = vmul.f32 %v1053, %v1185
        %v1194 = vsel %vm773, %v1079, 0.0
        %1195 = vadd.xlane.f32.xlu0 %v1194
        %v1196 = vpop.xlane.xlu0 %1195
        %v1197 = vsel %vm773, %v1081, 0.0
        %1198 = vadd.xlane.f32.xlu0 %v1197
        %v1199 = vpop.xlane.xlu0 %1198
        %v1200 = vsel %vm773, %v1083, 0.0
        %1201 = vadd.xlane.f32.xlu0 %v1200
        %v1202 = vpop.xlane.xlu0 %1201
        %v1203 = vsel %vm773, %v1085, 0.0
        %1204 = vadd.xlane.f32.xlu0 %v1203
        %v1205 = vpop.xlane.xlu0 %1204
        %v1206 = vsel %vm773, %v1087, 0.0
        %1207 = vadd.xlane.f32.xlu0 %v1206
        %v1208 = vpop.xlane.xlu0 %1207
        %v1209 = vsel %vm773, %v1089, 0.0
        %1210 = vadd.xlane.f32.xlu0 %v1209
        %v1211 = vpop.xlane.xlu0 %1210
        %v1212 = vsel %vm773, %v1091, 0.0
        %1213 = vadd.xlane.f32.xlu0 %v1212
        %v1214 = vpop.xlane.xlu0 %1213
        %v1215 = vsel %vm773, %v1093, 0.0
        %1216 = vadd.xlane.f32.xlu0 %v1215
        %v1217 = vpop.xlane.xlu0 %1216
        %v1218 = vrcp.pop %v1196
        %v1219 = vmul.f32 %v1196, %v1218
        %v1220 = vsub.f32 1.0, %v1219
        %v1221 = vmul.f32 %v1218, %v1220
        %v1222 = vadd.f32 %v1218, %v1221
        %vm1223 = vweird.f32 %v1196
        %vm1224 = vweird.f32 %v1218
        %vm1225 = vmor %vm1223, %vm1224
        %v1226 = vsel %vm1225, %v1218, %v1222
        %v1227 = vand.u32 2147483647, %v1196
        %vm1228 = vcmp.eq.f32.partialorder %v1227, 8.507059e+37
        %v1229 = vand.u32 %v1196, 2147483648
        %v1230 = vor.u32 1.1754944e-38, %v1229
        %v1231 = vsel %vm1228, %v1230, %v1226
        %v1232 = vrcp.pop %v1199
        %v1233 = vmul.f32 %v1199, %v1232
        %v1234 = vsub.f32 1.0, %v1233
        %v1235 = vmul.f32 %v1232, %v1234
        %v1236 = vadd.f32 %v1232, %v1235
        %vm1237 = vweird.f32 %v1199
        %vm1238 = vweird.f32 %v1232
        %vm1239 = vmor %vm1237, %vm1238
        %v1240 = vsel %vm1239, %v1232, %v1236
        %v1241 = vand.u32 2147483647, %v1199
        %vm1242 = vcmp.eq.f32.partialorder %v1241, 8.507059e+37
        %v1243 = vand.u32 %v1199, 2147483648
        %v1244 = vor.u32 1.1754944e-38, %v1243
        %v1245 = vsel %vm1242, %v1244, %v1240
        %v1246 = vrcp.pop %v1202
        %v1247 = vmul.f32 %v1202, %v1246
        %v1248 = vsub.f32 1.0, %v1247
        %v1249 = vmul.f32 %v1246, %v1248
        %v1250 = vadd.f32 %v1246, %v1249
        %vm1251 = vweird.f32 %v1202
        %vm1252 = vweird.f32 %v1246
        %vm1253 = vmor %vm1251, %vm1252
        %v1254 = vsel %vm1253, %v1246, %v1250
        %v1255 = vand.u32 2147483647, %v1202
        %vm1256 = vcmp.eq.f32.partialorder %v1255, 8.507059e+37
        %v1257 = vand.u32 %v1202, 2147483648
        %v1258 = vor.u32 1.1754944e-38, %v1257
        %v1259 = vsel %vm1256, %v1258, %v1254
        %v1260 = vrcp.pop %v1205
        %v1261 = vmul.f32 %v1205, %v1260
        %v1262 = vsub.f32 1.0, %v1261
        %v1263 = vmul.f32 %v1260, %v1262
        %v1264 = vadd.f32 %v1260, %v1263
        %vm1265 = vweird.f32 %v1205
        %vm1266 = vweird.f32 %v1260
        %vm1267 = vmor %vm1265, %vm1266
        %v1268 = vsel %vm1267, %v1260, %v1264
        %v1269 = vand.u32 2147483647, %v1205
        %vm1270 = vcmp.eq.f32.partialorder %v1269, 8.507059e+37
        %v1271 = vand.u32 %v1205, 2147483648
        %v1272 = vor.u32 1.1754944e-38, %v1271
        %v1273 = vsel %vm1270, %v1272, %v1268
        %v1274 = vrcp.pop %v1208
        %v1275 = vmul.f32 %v1208, %v1274
        %v1276 = vsub.f32 1.0, %v1275
        %v1277 = vmul.f32 %v1274, %v1276
        %v1278 = vadd.f32 %v1274, %v1277
        %vm1279 = vweird.f32 %v1208
        %vm1280 = vweird.f32 %v1274
        %vm1281 = vmor %vm1279, %vm1280
        %v1282 = vsel %vm1281, %v1274, %v1278
        %v1283 = vand.u32 2147483647, %v1208
        %vm1284 = vcmp.eq.f32.partialorder %v1283, 8.507059e+37
        %v1285 = vand.u32 %v1208, 2147483648
        %v1286 = vor.u32 1.1754944e-38, %v1285
        %v1287 = vsel %vm1284, %v1286, %v1282
        %v1288 = vrcp.pop %v1211
        %v1289 = vmul.f32 %v1211, %v1288
        %v1290 = vsub.f32 1.0, %v1289
        %v1291 = vmul.f32 %v1288, %v1290
        %v1292 = vadd.f32 %v1288, %v1291
        %vm1293 = vweird.f32 %v1211
        %vm1294 = vweird.f32 %v1288
        %vm1295 = vmor %vm1293, %vm1294
        %v1296 = vsel %vm1295, %v1288, %v1292
        %v1297 = vand.u32 2147483647, %v1211
        %vm1298 = vcmp.eq.f32.partialorder %v1297, 8.507059e+37
        %v1299 = vand.u32 %v1211, 2147483648
        %v1300 = vor.u32 1.1754944e-38, %v1299
        %v1301 = vsel %vm1298, %v1300, %v1296
        %v1302 = vrcp.pop %v1214
        %v1303 = vmul.f32 %v1214, %v1302
        %v1304 = vsub.f32 1.0, %v1303
        %v1305 = vmul.f32 %v1302, %v1304
        %v1306 = vadd.f32 %v1302, %v1305
        %vm1307 = vweird.f32 %v1214
        %vm1308 = vweird.f32 %v1302
        %vm1309 = vmor %vm1307, %vm1308
        %v1310 = vsel %vm1309, %v1302, %v1306
        %v1311 = vand.u32 2147483647, %v1214
        %vm1312 = vcmp.eq.f32.partialorder %v1311, 8.507059e+37
        %v1313 = vand.u32 %v1214, 2147483648
        %v1314 = vor.u32 1.1754944e-38, %v1313
        %v1315 = vsel %vm1312, %v1314, %v1310
        %v1316 = vrcp.pop %v1217
        %v1317 = vmul.f32 %v1217, %v1316
        %v1318 = vsub.f32 1.0, %v1317
        %v1319 = vmul.f32 %v1316, %v1318
        %v1320 = vadd.f32 %v1316, %v1319
        %vm1321 = vweird.f32 %v1217
        %vm1322 = vweird.f32 %v1316
        %vm1323 = vmor %vm1321, %vm1322
        %v1324 = vsel %vm1323, %v1316, %v1320
        %v1325 = vand.u32 2147483647, %v1217
        %vm1326 = vcmp.eq.f32.partialorder %v1325, 8.507059e+37
        %v1327 = vand.u32 %v1217, 2147483648
        %v1328 = vor.u32 1.1754944e-38, %v1327
        %v1329 = vsel %vm1326, %v1328, %v1324
        %v1330 = vmul.f32 %v1079, %v1231
        %v1331 = vmul.f32 %v1081, %v1245
        %v1332 = vmul.f32 %v1083, %v1259
        %v1333 = vmul.f32 %v1085, %v1273
        %v1334 = vmul.f32 %v1087, %v1287
        %v1335 = vmul.f32 %v1089, %v1301
        %v1336 = vmul.f32 %v1091, %v1315
        %v1337 = vmul.f32 %v1093, %v1329
        %v1339 = vsel %vm773, %v730, 0
        %v1342 = vsel %vm773, %v1330, 0
        %v1345 = vsel %vm773, %v1331, 0
        %1347 = vmatpush.xpose.msra.mxu0 0.0
        %1348 = vmatpush.xpose.msra.mxu0 0.0
        %1349 = vmatpush.xpose.msra.mxu0 0.0
        %1350 = vmatpush.xpose.msra.mxu0 0.0
        %1351 = vmatpush.xpose.msra.mxu0 0.0
        %1352 = vmatpush.xpose.msra.mxu0 0.0
        %1353 = vmatpush.xpose.msra.mxu0 0.0
        %1354 = vmatpush.xpose.msra.mxu0 0.0
        %1355 = vmatpush.xpose.msra.mxu0 0.0
        %1356 = vmatpush.xpose.msra.mxu0 0.0
        %1357 = vmatpush.xpose.msra.mxu0 0.0
        %1358 = vmatpush.xpose.msra.mxu0 0.0
        %1359 = vmatpush.xpose.msra.mxu0 0.0
        %1360 = vmatpush.xpose.msra.mxu0 0.0
        %1361 = vmatpush.xpose.msra.mxu0 %v1345
        %1362 = vmatpush.xpose.msra.mxu0 %v1342
        %1363 = vmatmul.f32.gmra.mxu0 %v1339
        %v1364 = vpop.f32.mrf.mxu0
        %v1365 = vadd.f32 0.0, %v1364
        %1366 = vdwg.mxu0
        %v1368 = vsel %vm773, %v733, 0
        %v1371 = vsel %vm773, %v1332, 0
        %v1374 = vsel %vm773, %v1333, 0
        %1376 = vmatpush.xpose.msra.mxu0 0.0
        %1377 = vmatpush.xpose.msra.mxu0 0.0
        %1378 = vmatpush.xpose.msra.mxu0 0.0
        %1379 = vmatpush.xpose.msra.mxu0 0.0
        %1380 = vmatpush.xpose.msra.mxu0 0.0
        %1381 = vmatpush.xpose.msra.mxu0 0.0
        %1382 = vmatpush.xpose.msra.mxu0 0.0
        %1383 = vmatpush.xpose.msra.mxu0 0.0
        %1384 = vmatpush.xpose.msra.mxu0 0.0
        %1385 = vmatpush.xpose.msra.mxu0 0.0
        %1386 = vmatpush.xpose.msra.mxu0 0.0
        %1387 = vmatpush.xpose.msra.mxu0 0.0
        %1388 = vmatpush.xpose.msra.mxu0 0.0
        %1389 = vmatpush.xpose.msra.mxu0 0.0
        %1390 = vmatpush.xpose.msra.mxu0 %v1374
        %1391 = vmatpush.xpose.msra.mxu0 %v1371
        %1392 = vmatmul.f32.gmra.mxu0 %v1368
        %v1393 = vpop.f32.mrf.mxu0
        %v1394 = vadd.f32 0.0, %v1393
        %1395 = vdwg.mxu0
        %v1397 = vsel %vm773, %v736, 0
        %v1400 = vsel %vm773, %v1334, 0
        %v1403 = vsel %vm773, %v1335, 0
        %1405 = vmatpush.xpose.msra.mxu0 0.0
        %1406 = vmatpush.xpose.msra.mxu0 0.0
        %1407 = vmatpush.xpose.msra.mxu0 0.0
        %1408 = vmatpush.xpose.msra.mxu0 0.0
        %1409 = vmatpush.xpose.msra.mxu0 0.0
        %1410 = vmatpush.xpose.msra.mxu0 0.0
        %1411 = vmatpush.xpose.msra.mxu0 0.0
        %1412 = vmatpush.xpose.msra.mxu0 0.0
        %1413 = vmatpush.xpose.msra.mxu0 0.0
        %1414 = vmatpush.xpose.msra.mxu0 0.0
        %1415 = vmatpush.xpose.msra.mxu0 0.0
        %1416 = vmatpush.xpose.msra.mxu0 0.0
        %1417 = vmatpush.xpose.msra.mxu0 0.0
        %1418 = vmatpush.xpose.msra.mxu0 0.0
        %1419 = vmatpush.xpose.msra.mxu0 %v1403
        %1420 = vmatpush.xpose.msra.mxu0 %v1400
        %1421 = vmatmul.f32.gmra.mxu0 %v1397
        %v1422 = vpop.f32.mrf.mxu0
        %v1423 = vadd.f32 0.0, %v1422
        %1424 = vdwg.mxu0
        %v1426 = vsel %vm773, %v739, 0
        %v1429 = vsel %vm773, %v1336, 0
        %v1432 = vsel %vm773, %v1337, 0
        %1434 = vmatpush.xpose.msra.mxu0 0.0
        %1435 = vmatpush.xpose.msra.mxu0 0.0
        %1436 = vmatpush.xpose.msra.mxu0 0.0
        %1437 = vmatpush.xpose.msra.mxu0 0.0
        %1438 = vmatpush.xpose.msra.mxu0 0.0
        %1439 = vmatpush.xpose.msra.mxu0 0.0
        %1440 = vmatpush.xpose.msra.mxu0 0.0
        %1441 = vmatpush.xpose.msra.mxu0 0.0
        %1442 = vmatpush.xpose.msra.mxu0 0.0
        %1443 = vmatpush.xpose.msra.mxu0 0.0
        %1444 = vmatpush.xpose.msra.mxu0 0.0
        %1445 = vmatpush.xpose.msra.mxu0 0.0
        %1446 = vmatpush.xpose.msra.mxu0 0.0
        %1447 = vmatpush.xpose.msra.mxu0 0.0
        %1448 = vmatpush.xpose.msra.mxu0 %v1432
        %1449 = vmatpush.xpose.msra.mxu0 %v1429
        %1450 = vmatmul.f32.gmra.mxu0 %v1426
        %v1451 = vpop.f32.mrf.mxu0
        %v1452 = vadd.f32 0.0, %v1451
        %1453 = vdwg.mxu0
        %vm1454 = vcmask 130048
        %v1456 = vsel %vm1454, %v681, 0
        %1458 = vmatpush.msra.mxu0 0.0
        %1459 = vmatpush.msra.mxu0 0.0
        %1460 = vmatpush.msra.mxu0 0.0
        %1461 = vmatpush.msra.mxu0 0.0
        %1462 = vmatpush.msra.mxu0 0.0
        %1463 = vmatpush.msra.mxu0 0.0
        %1464 = vmatpush.msra.mxu0 0.0
        %1465 = vmatpush.msra.mxu0 0.0
        %1466 = vmatpush.msra.mxu0 0.0
        %1467 = vmatpush.msra.mxu0 0.0
        %1468 = vmatpush.msra.mxu0 0.0
        %1469 = vmatpush.msra.mxu0 0.0
        %1470 = vmatpush.msra.mxu0 0.0
        %1471 = vmatpush.msra.mxu0 0.0
        %1472 = vmatpush.msra.mxu0 %v1187
        %1473 = vmatpush.msra.mxu0 %v1186
        %1474 = vmatmul.f32.gmra.mxu0 %v1456
        %v1475 = vpop.f32.mrf.mxu0
        %v1476 = vadd.f32 0.0, %v1475
        %1477 = vdwg.mxu0
        %v1479 = vsel %vm1454, %v684, 0
        %1481 = vmatpush.msra.mxu0 0.0
        %1482 = vmatpush.msra.mxu0 0.0
        %1483 = vmatpush.msra.mxu0 0.0
        %1484 = vmatpush.msra.mxu0 0.0
        %1485 = vmatpush.msra.mxu0 0.0
        %1486 = vmatpush.msra.mxu0 0.0
        %1487 = vmatpush.msra.mxu0 0.0
        %1488 = vmatpush.msra.mxu0 0.0
        %1489 = vmatpush.msra.mxu0 0.0
        %1490 = vmatpush.msra.mxu0 0.0
        %1491 = vmatpush.msra.mxu0 0.0
        %1492 = vmatpush.msra.mxu0 0.0
        %1493 = vmatpush.msra.mxu0 0.0
        %1494 = vmatpush.msra.mxu0 0.0
        %1495 = vmatpush.msra.mxu0 %v1189
        %1496 = vmatpush.msra.mxu0 %v1188
        %1497 = vmatmul.f32.gmra.mxu0 %v1479
        %v1498 = vpop.f32.mrf.mxu0
        %v1499 = vadd.f32 0.0, %v1498
        %1500 = vdwg.mxu0
        %v1502 = vsel %vm1454, %v687, 0
        %1504 = vmatpush.msra.mxu0 0.0
        %1505 = vmatpush.msra.mxu0 0.0
        %1506 = vmatpush.msra.mxu0 0.0
        %1507 = vmatpush.msra.mxu0 0.0
        %1508 = vmatpush.msra.mxu0 0.0
        %1509 = vmatpush.msra.mxu0 0.0
        %1510 = vmatpush.msra.mxu0 0.0
        %1511 = vmatpush.msra.mxu0 0.0
        %1512 = vmatpush.msra.mxu0 0.0
        %1513 = vmatpush.msra.mxu0 0.0
        %1514 = vmatpush.msra.mxu0 0.0
        %1515 = vmatpush.msra.mxu0 0.0
        %1516 = vmatpush.msra.mxu0 0.0
        %1517 = vmatpush.msra.mxu0 0.0
        %1518 = vmatpush.msra.mxu0 %v1191
        %1519 = vmatpush.msra.mxu0 %v1190
        %1520 = vmatmul.f32.gmra.mxu0 %v1502
        %v1521 = vpop.f32.mrf.mxu0
        %v1522 = vadd.f32 0.0, %v1521
        %1523 = vdwg.mxu0
        %v1525 = vsel %vm1454, %v690, 0
        %1527 = vmatpush.msra.mxu0 0.0
        %1528 = vmatpush.msra.mxu0 0.0
        %1529 = vmatpush.msra.mxu0 0.0
        %1530 = vmatpush.msra.mxu0 0.0
        %1531 = vmatpush.msra.mxu0 0.0
        %1532 = vmatpush.msra.mxu0 0.0
        %1533 = vmatpush.msra.mxu0 0.0
        %1534 = vmatpush.msra.mxu0 0.0
        %1535 = vmatpush.msra.mxu0 0.0
        %1536 = vmatpush.msra.mxu0 0.0
        %1537 = vmatpush.msra.mxu0 0.0
        %1538 = vmatpush.msra.mxu0 0.0
        %1539 = vmatpush.msra.mxu0 0.0
        %1540 = vmatpush.msra.mxu0 0.0
        %1541 = vmatpush.msra.mxu0 %v1193
        %1542 = vmatpush.msra.mxu0 %v1192
        %1543 = vmatmul.f32.gmra.mxu0 %v1525
        %v1544 = vpop.f32.mrf.mxu0
        %v1545 = vadd.f32 0.0, %v1544
        %1546 = vdwg.mxu0
        %v1547 = vld [vmem:[#allocation11] sm:$0xff]
        %v1548 = vld [vmem:[#allocation11 + $0x8] sm:$0xff]
        %v1549 = vld [vmem:[#allocation11 + $0x10] sm:$0xff]
        %v1550 = vld [vmem:[#allocation11 + $0x18] sm:$0xff]
        %1551 = vxpose.xlu0.b32.start [1/16] %v1365, 128
        %1552 = vxpose.xlu0.b32.cont [2/16] %v1394, 128
        %1553 = vxpose.xlu0.b32.cont [3/16] %v1423, 128
        %1554 = vxpose.xlu0.b32.cont [4/16] %v1452, 128
        %1555 = vxpose.xlu0.b32.cont [5/16] 0.0, 128
        %1556 = vxpose.xlu0.b32.cont [6/16] 0.0, 128
        %1557 = vxpose.xlu0.b32.cont [7/16] 0.0, 128
        %1558 = vxpose.xlu0.b32.cont [8/16] 0.0, 128
        %1559 = vxpose.xlu0.b32.cont [9/16] 0.0, 128
        %1560 = vxpose.xlu0.b32.cont [10/16] 0.0, 128
        %1561 = vxpose.xlu0.b32.cont [11/16] 0.0, 128
        %1562 = vxpose.xlu0.b32.cont [12/16] 0.0, 128
        %1563 = vxpose.xlu0.b32.cont [13/16] 0.0, 128
        %1564 = vxpose.xlu0.b32.cont [14/16] 0.0, 128
        %1565 = vxpose.xlu0.b32.cont [15/16] 0.0, 128
        %1566 = vxpose.xlu0.b32.end [16/16] 0.0, 128
        %v1567 = vpop.trf.xlu0
        %v1568 = vpop.trf.xlu0
        %v1569 = vpop.trf.xlu0
        %v1570 = vpop.trf.xlu0
        %v1571 = vpop.trf.xlu0
        %v1572 = vpop.trf.xlu0
        %v1573 = vpop.trf.xlu0
        %v1574 = vpop.trf.xlu0
        %v1575 = vpop.trf.xlu0
        %v1576 = vpop.trf.xlu0
        %v1577 = vpop.trf.xlu0
        %v1578 = vpop.trf.xlu0
        %v1579 = vpop.trf.xlu0
        %v1580 = vpop.trf.xlu0
        %v1581 = vpop.trf.xlu0
        %v1582 = vpop.trf.xlu0
        %v1584 = vsel %vm543, %v1567, 0
        %v1587 = vsel %vm543, %v1568, 0
        %1589 = vmatpush.msra.mxu0 0.0
        %1590 = vmatpush.msra.mxu0 0.0
        %1591 = vmatpush.msra.mxu0 0.0
        %1592 = vmatpush.msra.mxu0 0.0
        %1593 = vmatpush.msra.mxu0 0.0
        %1594 = vmatpush.msra.mxu0 0.0
        %1595 = vmatpush.msra.mxu0 0.0
        %1596 = vmatpush.msra.mxu0 0.0
        %1597 = vmatpush.msra.mxu0 0.0
        %1598 = vmatpush.msra.mxu0 0.0
        %1599 = vmatpush.msra.mxu0 0.0
        %1600 = vmatpush.msra.mxu0 0.0
        %1601 = vmatpush.msra.mxu0 %v1550
        %1602 = vmatpush.msra.mxu0 %v1549
        %1603 = vmatpush.msra.mxu0 %v1548
        %1604 = vmatpush.msra.mxu0 %v1547
        %1605 = vmatmul.f32.gmra.mxu0 %v1584
        %v1606 = vpop.f32.mrf.mxu0
        %v1607 = vadd.f32 %v530, %v1606
        %1608 = vmatmul.f32.gmra.mxu0 %v1587
        %v1609 = vpop.f32.mrf.mxu0
        %v1610 = vadd.f32 %v531, %v1609
        %1611 = vdwg.mxu0
        %s1612 = scalar_lea.vmem [#allocation11], 32
        %v1613 = vld [vmem:[%s1612] sm:$0xff]
        %v1614 = vld [vmem:[%s1612 + $0x8] sm:$0xff]
        %v1615 = vld [vmem:[%s1612 + $0x10] sm:$0xff]
        %v1616 = vld [vmem:[%s1612 + $0x18] sm:$0xff]
        %1617 = vxpose.xlu0.b32.start [1/16] %v1476, 128
        %1618 = vxpose.xlu0.b32.cont [2/16] %v1499, 128
        %1619 = vxpose.xlu0.b32.cont [3/16] %v1522, 128
        %1620 = vxpose.xlu0.b32.cont [4/16] %v1545, 128
        %1621 = vxpose.xlu0.b32.cont [5/16] 0.0, 128
        %1622 = vxpose.xlu0.b32.cont [6/16] 0.0, 128
        %1623 = vxpose.xlu0.b32.cont [7/16] 0.0, 128
        %1624 = vxpose.xlu0.b32.cont [8/16] 0.0, 128
        %1625 = vxpose.xlu0.b32.cont [9/16] 0.0, 128
        %1626 = vxpose.xlu0.b32.cont [10/16] 0.0, 128
        %1627 = vxpose.xlu0.b32.cont [11/16] 0.0, 128
        %1628 = vxpose.xlu0.b32.cont [12/16] 0.0, 128
        %1629 = vxpose.xlu0.b32.cont [13/16] 0.0, 128
        %1630 = vxpose.xlu0.b32.cont [14/16] 0.0, 128
        %1631 = vxpose.xlu0.b32.cont [15/16] 0.0, 128
        %1632 = vxpose.xlu0.b32.end [16/16] 0.0, 128
        %v1633 = vpop.trf.xlu0
        %v1634 = vpop.trf.xlu0
        %v1635 = vpop.trf.xlu0
        %v1636 = vpop.trf.xlu0
        %v1637 = vpop.trf.xlu0
        %v1638 = vpop.trf.xlu0
        %v1639 = vpop.trf.xlu0
        %v1640 = vpop.trf.xlu0
        %v1641 = vpop.trf.xlu0
        %v1642 = vpop.trf.xlu0
        %v1643 = vpop.trf.xlu0
        %v1644 = vpop.trf.xlu0
        %v1645 = vpop.trf.xlu0
        %v1646 = vpop.trf.xlu0
        %v1647 = vpop.trf.xlu0
        %v1648 = vpop.trf.xlu0
        %v1650 = vsel %vm543, %v1633, 0
        %1652 = vmatpush.msra.mxu0 0.0
        %1653 = vmatpush.msra.mxu0 0.0
        %1654 = vmatpush.msra.mxu0 0.0
        %1655 = vmatpush.msra.mxu0 0.0
        %1656 = vmatpush.msra.mxu0 0.0
        %1657 = vmatpush.msra.mxu0 0.0
        %1658 = vmatpush.msra.mxu0 0.0
        %1659 = vmatpush.msra.mxu0 0.0
        %1660 = vmatpush.msra.mxu0 0.0
        %1661 = vmatpush.msra.mxu0 0.0
        %1662 = vmatpush.msra.mxu0 0.0
        %1663 = vmatpush.msra.mxu0 0.0
        %1664 = vmatpush.msra.mxu0 %v1616
        %1665 = vmatpush.msra.mxu0 %v1615
        %1666 = vmatpush.msra.mxu0 %v1614
        %1667 = vmatpush.msra.mxu0 %v1613
        %1668 = vmatmul.f32.gmra.mxu0 %v1650
        %v1669 = vpop.f32.mrf.mxu0
        %v1670 = vadd.f32 %v532, %v1669
        %1671 = vdwg.mxu0
        %v1672 = vld [vmem:[%s7] sm:$0x1]
        %s1673 = scalar_lea.vmem %s7, 1
        %v1674 = vld [vmem:[%s1673] sm:$0x1]
        %v1675 = vsel %vm543, %v1607, 0.0
        %1676 = vadd.xlane.f32.xlu0 %v1675
        %v1677 = vpop.xlane.xlu0 %1676
        %v1678 = vsel %vm543, %v1610, 0.0
        %1679 = vadd.xlane.f32.xlu0 %v1678
        %v1680 = vpop.xlane.xlu0 %1679
        %v1681 = vrcp.pop 32.0
        %v1682 = vmul.f32 32.0, %v1681
        %v1683 = vsub.f32 1.0, %v1682
        %v1684 = vmul.f32 %v1681, %v1683
        %v1685 = vadd.f32 %v1681, %v1684
        %vm1686 = vweird.f32 %v1681
        %v1687 = vsel %vm1686, %v1681, %v1685
        %v1688 = vmul.f32 %v1677, %v1687
        %v1689 = vmul.f32 %v1680, %v1687
        %v1690 = vsub.f32 %v1607, %v1688
        %v1691 = vsub.f32 %v1610, %v1689
        %v1692 = vmul.f32 %v1690, %v1690
        %v1693 = vmul.f32 %v1691, %v1691
        %v1694 = vsel %vm543, %v1692, 0.0
        %1695 = vadd.xlane.f32.xlu0 %v1694
        %v1696 = vpop.xlane.xlu0 %1695
        %v1697 = vsel %vm543, %v1693, 0.0
        %1698 = vadd.xlane.f32.xlu0 %v1697
        %v1699 = vpop.xlane.xlu0 %1698
        %v1700 = vmul.f32 %v1696, %v1687
        %v1701 = vmul.f32 %v1699, %v1687
        %v1702 = vadd.f32 %v1700, 1e-05
        %v1703 = vadd.f32 %v1701, 1e-05
        %v1704 = vrsqrt.pop %v1702
        %v1705 = vmul.f32 %v1704, %v1702
        %v1706 = vmul.f32 %v1705, %v1704
        %v1707 = vmul.f32 0.5, %v1706
        %v1708 = vsub.f32 1.5, %v1707
        %v1709 = vmul.f32 %v1704, %v1708
        %vm1710 = vweird.f32 %v1702
        %vm1711 = vweird.f32 %v1704
        %vm1712 = vmor %vm1710, %vm1711
        %v1713 = vsel %vm1712, %v1704, %v1709
        %v1714 = vrsqrt.pop %v1703
        %v1715 = vmul.f32 %v1714, %v1703
        %v1716 = vmul.f32 %v1715, %v1714
        %v1717 = vmul.f32 0.5, %v1716
        %v1718 = vsub.f32 1.5, %v1717
        %v1719 = vmul.f32 %v1714, %v1718
        %vm1720 = vweird.f32 %v1703
        %vm1721 = vweird.f32 %v1714
        %vm1722 = vmor %vm1720, %vm1721
        %v1723 = vsel %vm1722, %v1714, %v1719
        %v1724 = vmul.f32 %v1690, %v1713
        %v1725 = vmul.f32 %v1691, %v1723
        %v1727 = vperm.slane %v1672, 0
        %v1729 = vmul.f32 %v1724, %v1727
        %v1730 = vmul.f32 %v1725, %v1727
        %v1732 = vperm.slane %v1674, 0
        %v1734 = vadd.f32 %v1729, %v1732
        %v1735 = vadd.f32 %v1730, %v1732
        %s1736 = scalar_lea.vmem %s7, 2
        %v1737 = vld [vmem:[%s1736] sm:$0x1]
        %s1738 = scalar_lea.vmem %s7, 3
        %v1739 = vld [vmem:[%s1738] sm:$0x1]
        %v1740 = vsel %vm543, %v1670, 0.0
        %1741 = vadd.xlane.f32.xlu0 %v1740
        %v1742 = vpop.xlane.xlu0 %1741
        %v1743 = vmul.f32 %v1742, %v1687
        %v1744 = vsub.f32 %v1670, %v1743
        %v1745 = vmul.f32 %v1744, %v1744
        %v1746 = vsel %vm543, %v1745, 0.0
        %1747 = vadd.xlane.f32.xlu0 %v1746
        %v1748 = vpop.xlane.xlu0 %1747
        %v1749 = vmul.f32 %v1748, %v1687
        %v1750 = vadd.f32 %v1749, 1e-05
        %v1751 = vrsqrt.pop %v1750
        %v1752 = vmul.f32 %v1751, %v1750
        %v1753 = vmul.f32 %v1752, %v1751
        %v1754 = vmul.f32 0.5, %v1753
        %v1755 = vsub.f32 1.5, %v1754
        %v1756 = vmul.f32 %v1751, %v1755
        %vm1757 = vweird.f32 %v1750
        %vm1758 = vweird.f32 %v1751
        %vm1759 = vmor %vm1757, %vm1758
        %v1760 = vsel %vm1759, %v1751, %v1756
        %v1761 = vmul.f32 %v1744, %v1760
        %v1763 = vperm.slane %v1737, 0
        %v1765 = vmul.f32 %v1761, %v1763
        %v1767 = vperm.slane %v1739, 0
        %v1769 = vadd.f32 %v1765, %v1767
        %s1770 = scalar_lea.vmem %s7, 4
        %v1771 = vld [vmem:[%s1770] sm:$0x1]
        %v1772 = vld [vmem:[#allocation13] sm:$0xff]
        %v1773 = vld [vmem:[#allocation13 + $0x8] sm:$0xff]
        %v1774 = vld [vmem:[#allocation13 + $0x10] sm:$0xff]
        %v1775 = vld [vmem:[#allocation13 + $0x18] sm:$0xff]
        %v1777 = vsel %vm543, %v1734, 0
        %v1780 = vsel %vm543, %v1735, 0
        %1782 = vmatpush.msra.mxu0 0.0
        %1783 = vmatpush.msra.mxu0 0.0
        %1784 = vmatpush.msra.mxu0 0.0
        %1785 = vmatpush.msra.mxu0 0.0
        %1786 = vmatpush.msra.mxu0 0.0
        %1787 = vmatpush.msra.mxu0 0.0
        %1788 = vmatpush.msra.mxu0 0.0
        %1789 = vmatpush.msra.mxu0 0.0
        %1790 = vmatpush.msra.mxu0 0.0
        %1791 = vmatpush.msra.mxu0 0.0
        %1792 = vmatpush.msra.mxu0 0.0
        %1793 = vmatpush.msra.mxu0 0.0
        %1794 = vmatpush.msra.mxu0 %v1775
        %1795 = vmatpush.msra.mxu0 %v1774
        %1796 = vmatpush.msra.mxu0 %v1773
        %1797 = vmatpush.msra.mxu0 %v1772
        %1798 = vmatmul.f32.gmra.mxu0 %v1777
        %v1799 = vpop.f32.mrf.mxu0
        %v1800 = vadd.f32 0.0, %v1799
        %1801 = vmatmul.f32.gmra.mxu0 %v1780
        %v1802 = vpop.f32.mrf.mxu0
        %v1803 = vadd.f32 0.0, %v1802
        %1804 = vdwg.mxu0
        %v1805 = vmax.f32 %v1800, 0.0
        %v1806 = vmax.f32 %v1803, 0.0
        %s1807 = scalar_lea.vmem [#allocation13], 32
        %v1808 = vld [vmem:[%s1807] sm:$0xff]
        %v1809 = vld [vmem:[%s1807 + $0x8] sm:$0xff]
        %v1810 = vld [vmem:[%s1807 + $0x10] sm:$0xff]
        %v1811 = vld [vmem:[%s1807 + $0x18] sm:$0xff]
        %v1813 = vperm.slane %v1771, 0
        %v1816 = vsel %vm543, %v1805, 0
        %v1819 = vsel %vm543, %v1806, 0
        %1821 = vmatpush.msra.mxu0 0.0
        %1822 = vmatpush.msra.mxu0 0.0
        %1823 = vmatpush.msra.mxu0 0.0
        %1824 = vmatpush.msra.mxu0 0.0
        %1825 = vmatpush.msra.mxu0 0.0
        %1826 = vmatpush.msra.mxu0 0.0
        %1827 = vmatpush.msra.mxu0 0.0
        %1828 = vmatpush.msra.mxu0 0.0
        %1829 = vmatpush.msra.mxu0 0.0
        %1830 = vmatpush.msra.mxu0 0.0
        %1831 = vmatpush.msra.mxu0 0.0
        %1832 = vmatpush.msra.mxu0 0.0
        %1833 = vmatpush.msra.mxu0 %v1811
        %1834 = vmatpush.msra.mxu0 %v1810
        %1835 = vmatpush.msra.mxu0 %v1809
        %1836 = vmatpush.msra.mxu0 %v1808
        %1837 = vmatmul.f32.gmra.mxu0 %v1816
        %v1838 = vpop.f32.mrf.mxu0
        %v1839 = vadd.f32 %v1813, %v1838
        %1840 = vmatmul.f32.gmra.mxu0 %v1819
        %v1841 = vpop.f32.mrf.mxu0
        %v1842 = vadd.f32 %v1813, %v1841
        %1843 = vdwg.mxu0
        %v1844 = vadd.f32 %v1839, %v1734
        %v1845 = vadd.f32 %v1842, %v1735
        %1846 = vst.msk [vmem:[%s522] sm:$0xff] %vm543, %v1844
        %1847 = vst.msk [vmem:[%s522 + $0x8] sm:$0xff] %vm543, %v1845
        %s1848 = scalar_lea.vmem %s7, 5
        %v1849 = vld [vmem:[%s1848] sm:$0x1]
        %s1850 = scalar_lea.vmem [#allocation13], 64
        %v1851 = vld [vmem:[%s1850] sm:$0xff]
        %v1852 = vld [vmem:[%s1850 + $0x8] sm:$0xff]
        %v1853 = vld [vmem:[%s1850 + $0x10] sm:$0xff]
        %v1854 = vld [vmem:[%s1850 + $0x18] sm:$0xff]
        %v1856 = vsel %vm543, %v1769, 0
        %1858 = vmatpush.msra.mxu0 0.0
        %1859 = vmatpush.msra.mxu0 0.0
        %1860 = vmatpush.msra.mxu0 0.0
        %1861 = vmatpush.msra.mxu0 0.0
        %1862 = vmatpush.msra.mxu0 0.0
        %1863 = vmatpush.msra.mxu0 0.0
        %1864 = vmatpush.msra.mxu0 0.0
        %1865 = vmatpush.msra.mxu0 0.0
        %1866 = vmatpush.msra.mxu0 0.0
        %1867 = vmatpush.msra.mxu0 0.0
        %1868 = vmatpush.msra.mxu0 0.0
        %1869 = vmatpush.msra.mxu0 0.0
        %1870 = vmatpush.msra.mxu0 %v1854
        %1871 = vmatpush.msra.mxu0 %v1853
        %1872 = vmatpush.msra.mxu0 %v1852
        %1873 = vmatpush.msra.mxu0 %v1851
        %1874 = vmatmul.f32.gmra.mxu0 %v1856
        %v1875 = vpop.f32.mrf.mxu0
        %v1876 = vadd.f32 0.0, %v1875
        %1877 = vdwg.mxu0
        %v1878 = vmax.f32 %v1876, 0.0
        %s1879 = scalar_lea.vmem [#allocation13], 96
        %v1880 = vld [vmem:[%s1879] sm:$0xff]
        %v1881 = vld [vmem:[%s1879 + $0x8] sm:$0xff]
        %v1882 = vld [vmem:[%s1879 + $0x10] sm:$0xff]
        %v1883 = vld [vmem:[%s1879 + $0x18] sm:$0xff]
        %v1885 = vperm.slane %v1849, 0
        %v1888 = vsel %vm543, %v1878, 0
        %1890 = vmatpush.msra.mxu0 0.0
        %1891 = vmatpush.msra.mxu0 0.0
        %1892 = vmatpush.msra.mxu0 0.0
        %1893 = vmatpush.msra.mxu0 0.0
        %1894 = vmatpush.msra.mxu0 0.0
        %1895 = vmatpush.msra.mxu0 0.0
        %1896 = vmatpush.msra.mxu0 0.0
        %1897 = vmatpush.msra.mxu0 0.0
        %1898 = vmatpush.msra.mxu0 0.0
        %1899 = vmatpush.msra.mxu0 0.0
        %1900 = vmatpush.msra.mxu0 0.0
        %1901 = vmatpush.msra.mxu0 0.0
        %1902 = vmatpush.msra.mxu0 %v1883
        %1903 = vmatpush.msra.mxu0 %v1882
        %1904 = vmatpush.msra.mxu0 %v1881
        %1905 = vmatpush.msra.mxu0 %v1880
        %1906 = vmatmul.f32.gmra.mxu0 %v1888
        %v1907 = vpop.f32.mrf.mxu0
        %v1908 = vadd.f32 %v1885, %v1907
        %1909 = vdwg.mxu0
        %v1910 = vadd.f32 %v1908, %v1769
        %1911 = vst.msk [vmem:[%s529] sm:$0xff] %vm543, %v1910
        %s1912 = sand.u32 %s233, 1
        %s1913 = scalar_lea.sflag [#allocation4], %s1912
        %s1914 = sand.u32 %s233, 1
        %s1915 = smul.addr %s1914, 16
        %s1916 = scalar_lea.vmem [#allocation14], %s1915
        %s1917 = sand.u32 %s259, 1
        %s1918 = scalar_lea.sflag [#allocation16], %s1917
        %s1919 = sand.u32 %s259, 1
        %s1920 = smul.addr %s1919, 8
        %s1921 = scalar_lea.vmem [#allocation15], %s1920
        // Predicated region
        $region81: #{co_block.1} parent=51 // pred_check
          %p1922 = pneg %p243
        $region82: #{co_block.1} parent=51 // pred_check_branch
          %1924 = sbr.rel (%p1922) target = $region84
        $region83: #{co_block.1} parent=51 // pred_region
          %1926 = vsyncadd %s1913, 0
          %s1927 = smul.addr %s37, 2
          %s1928 = smul.addr %s1927, 8
          %s1929 = scalar_lea.hbm %s8, %s1928
          %s1930 = sshll.u32 %s1916, 4
          %s1931 = int_to_ptr.vmem [resolvable:$true] %s1930
          %s1932 = sshll.u32 %s1929, 4
          %s1933 = int_to_ptr.hbm [resolvable:$true] %s1932
          %1938 = dma.vmem_to_hbm [thread:$0]  %s1931, 256, %s1933, %s1913, 128, 128, 8
        $region84: #{co_block.1} parent=51 // pred_fallthru
          _
        // Predicated region
        $region85: #{co_block.1} parent=51 // pred_check
          %p1939 = pneg %p269
        $region86: #{co_block.1} parent=51 // pred_check_branch
          %1941 = sbr.rel (%p1939) target = $region88
        $region87: #{co_block.1} parent=51 // pred_region
          %1943 = vsyncadd %s1918, 0
          %s1944 = smul.addr %s37, 8
          %s1945 = scalar_lea.hbm %s9, %s1944
          %s1947 = sshll.u32 %s1921, 4
          %s1948 = int_to_ptr.vmem [resolvable:$true] %s1947
          %s1949 = sshll.u32 %s1945, 4
          %s1950 = int_to_ptr.hbm [resolvable:$true] %s1949
          %1952 = dma.vmem_to_hbm [thread:$0]  %s1948, 128, %s1950, %s1918
        $region88: #{co_block.1} parent=51 // pred_fallthru
          _
      $region52: #{co_block.1} parent=5 // pred_fallthru
        _
      %p1953 = scmp.le.s32.totalorder 2, %s32
      // Predicated region
      $region89: #{co_block.1} parent=5 // pred_check
        %p1954 = pneg %p1953
      $region90: #{co_block.1} parent=5 // pred_check_branch
        %1956 = sbr.rel (%p1954) target = $region92
      $region91: #{co_block.1} parent=5 // pred_region
        %s1957 = ssub.s32 %s32, 2
        // Predicated region
        $region93: #{co_block.1} parent=91 // pred_check
          %p1958 = pneg %p249
        $region94: #{co_block.1} parent=91 // pred_check_branch
          %1960 = sbr.rel (%p1958) target = $region96
        $region95: #{co_block.1} parent=91 // pred_region
          %s1961 = sand.u32 %s234, 1
          %s1962 = scalar_lea.sflag [#allocation4], %s1961
          %s1963 = sand.u32 %s234, 1
          %s1964 = smul.addr %s1963, 16
          %s1965 = scalar_lea.vmem [#allocation14], %s1964
          %1967 = dma.done %s1962, 256
        $region96: #{co_block.1} parent=91 // pred_fallthru
          _
        // Predicated region
        $region97: #{co_block.1} parent=91 // pred_check
          %p1968 = pneg %p275
        $region98: #{co_block.1} parent=91 // pred_check_branch
          %1970 = sbr.rel (%p1968) target = $region100
        $region99: #{co_block.1} parent=91 // pred_region
          %s1971 = sand.u32 %s260, 1
          %s1972 = scalar_lea.sflag [#allocation16], %s1971
          %s1973 = sand.u32 %s260, 1
          %s1974 = smul.addr %s1973, 8
          %s1975 = scalar_lea.vmem [#allocation15], %s1974
          %1977 = dma.done %s1972, 128
        $region100: #{co_block.1} parent=91 // pred_fallthru
          _
      $region92: #{co_block.1} parent=5 // pred_fallthru
        _
    $region6: #{co_block.1} parent=1 // loop_footer
      %s36 = sadd.s32 1, %s32
    $region7: #{co_block.1} parent=1 // loop_footer_branch
      %31 = sbr.rel target = $region3
    $region8: #{co_block.1} parent=1 // loop_exit
      _
    %1978 = vsyncpa [#allocation3], 1
    %s1979 = scalar_lea.sflag [#allocation3], 1
    %1980 = vsyncpa %s1979, 1
    %1981 = vsyncpa [#allocation6], 1
    %s1982 = scalar_lea.sflag [#allocation6], 1
    %1983 = vsyncpa %s1982, 1
    %1984 = vsyncpa [#allocation9], 1
    %s1985 = scalar_lea.sflag [#allocation9], 1
    %1986 = vsyncpa %s1985, 1
    %1987 = vsyncpa [#allocation12], 1
    %1988 = vsyncpa [#allocation4], 1
    %s1989 = scalar_lea.sflag [#allocation4], 1
    %1990 = vsyncpa %s1989, 1
    %1991 = vsyncpa [#allocation16], 1
    %s1992 = scalar_lea.sflag [#allocation16], 1
    %1993 = vsyncpa %s1992, 1

</llo_original>
